<compile_context>
chip_gen: v6e
topology: v6e:2x2x1
jax: 0.10.0
libtpu: 0.0.40
codegen_flags: <defaults>
</compile_context>

<pallas_src>
import jax
import jax.numpy as jnp
from jax import lax
from jax.experimental import pallas as pl
from jax.experimental.pallas import tpu as pltpu

LN_EPS = 1e-5


def _round_up(n, m):
    return ((n + m - 1) // m) * m


def _physical_vmem_bytes():
    """Per-core VMEM capacity; conservative v7x default if the query fails."""
    try:
        return int(pltpu.get_tpu_info().vmem_capacity_bytes)
    except Exception:
        return 64 << 20


def _vmem_bytes_estimate(tb, H, x_itemsize=4, w_itemsize=2):
    """VMEM footprint with Buffered(1) weights and double-buffered activation tiles."""
    H2 = 2 * H
    weights = 2 * H * H2 * w_itemsize            # w1 + w2, single-buffered
    small = (2 * H + 2 * H2 + H2 + H) * 4        # LN params + biases (f32), single-buffered
    io = 2 * 2 * tb * H * x_itemsize             # x + out tiles, double-buffered pipeline
    work = 5 * tb * H2 * 4                       # live f32 intermediates headroom
    return weights + small + io + work


def _choose_tb(B, H, phys_vmem):
    """Largest batch tile that fits VMEM, then shrink for a >=2 (ideally even) grid."""
    b8 = _round_up(max(B, 1), 8)
    budget = phys_vmem - (4 << 20)
    tb = 8
    for cand in (512, 256, 128, 64, 32, 16, 8):
        if cand > b8:
            continue
        if _vmem_bytes_estimate(cand, H) + (4 << 20) <= budget:
            tb = cand
            break
    # >= 2 grid steps so the "parallel" batch axis can shard across v7x's 2 TCs.
    while tb > 8 and _round_up(B, tb) // tb < 2:
        tb = max(8, _round_up(tb // 2, 8))
    # Soft preference: even step count for a balanced megacore split.
    steps = _round_up(B, tb) // tb
    if steps > 1 and steps % 2 == 1:
        for cand in range(tb - 8, 7, -8):
            s = _round_up(B, cand) // cand
            if s % 2 == 0 and s <= 2 * steps:
                tb = cand
                break
    return tb


def _ln_fused(x, g, b, inv_n):
    """One-pass LayerNorm: sum & sum-of-squares together, mean folded into the shift."""
    s1 = jnp.sum(x, axis=-1, keepdims=True)
    s2 = jnp.sum(x * x, axis=-1, keepdims=True)
    mean = s1 * inv_n
    var = jnp.maximum(s2 * inv_n - mean * mean, 0.0)
    a = lax.rsqrt(var + LN_EPS) * g
    return x * a + (b - mean * a)


def _residual_block_kernel(
    x_ref,        # (TB, H)   activation tile
    g1_ref,       # (1, H)    LayerNorm1 weight
    b1n_ref,      # (1, H)    LayerNorm1 bias
    w1_ref,       # (H, 2H)   Linear1 weight (in x out), bf16
    b1_ref,       # (1, 2H)   Linear1 bias
    g2_ref,       # (1, 2H)   LayerNorm2 weight
    b2n_ref,      # (1, 2H)   LayerNorm2 bias
    w2_ref,       # (2H, H)   Linear2 weight (in x out), bf16
    b2_ref,       # (1, H)    Linear2 bias
    o_ref,        # (TB, H)
):
    tb, H = x_ref.shape
    H2 = w1_ref.shape[1]
    inv_h = jnp.float32(1.0 / H)
    inv_h2 = jnp.float32(1.0 / H2)

    g1 = g1_ref[...].astype(jnp.float32)
    b1n = b1n_ref[...].astype(jnp.float32)
    b1 = b1_ref[...].astype(jnp.float32)
    g2 = g2_ref[...].astype(jnp.float32)
    b2n = b2n_ref[...].astype(jnp.float32)
    b2 = b2_ref[...].astype(jnp.float32)
    w1 = w1_ref[...]
    w2 = w2_ref[...]

    # Static 2x unroll over independent row sub-chunks: chunk B's matmul can occupy
    # the MXU while chunk A's LayerNorm / bias / ReLU runs on the VPU/XLU/EUP.
    n_chunks = 2 if (tb % 16 == 0) else 1
    rows = tb // n_chunks

    for c in range(n_chunks):
        sl = pl.ds(c * rows, rows)                       # static, sublane-aligned view
        x = x_ref[sl, :].astype(jnp.float32)             # also the residual

        h = _ln_fused(x, g1, b1n, inv_h)                 # LayerNorm 1 (f32)
        h = jnp.dot(h.astype(w1.dtype), w1,
                    preferred_element_type=jnp.float32)  # Linear 1 (bf16 MXU, f32 acc)
        h = jnp.maximum(h + b1, 0.0)                     # bias + ReLU
        h = _ln_fused(h, g2, b2n, inv_h2)                # LayerNorm 2 (f32)
        # Dropout: identity in eval mode (nn.Dropout only acts in training).
        # TODO(synk): training-mode dropout (pltpu.prng_random_bits mask + 1/(1-p) scale).
        y = jnp.dot(h.astype(w2.dtype), w2,
                    preferred_element_type=jnp.float32)  # Linear 2 (bf16 MXU, f32 acc)
        y = y + b2

        o_ref[sl, :] = jnp.maximum(y + x, 0.0).astype(o_ref.dtype)   # residual + ReLU


def residual_block(x, params, *, tb=None):
    """x: (B, H) float32. params: LN/Linear parameters (weights bf16 preferred)."""
    B, H = x.shape
    H2 = 2 * H
    phys = _physical_vmem_bytes()

    # Keep the MXU on the bf16 fast path (also halves resident weight VMEM).
    w1 = params["w1"]
    w2 = params["w2"]
    if w1.dtype == jnp.float32:
        w1 = w1.astype(jnp.bfloat16)
    if w2.dtype == jnp.float32:
        w2 = w2.astype(jnp.bfloat16)

    x_itemsize = jnp.dtype(x.dtype).itemsize
    w_itemsize = jnp.dtype(w1.dtype).itemsize

    # Resident-weight path requires both weights + a minimal tile to fit VMEM.
    if _vmem_bytes_estimate(8, H, x_itemsize, w_itemsize) + (4 << 20) > phys - (4 << 20):
        # TODO(synk): K-/feature-streamed weight path (emit_pipeline + partial LN2 stats)
        # for hidden sizes whose weights do not fit v7x's 64 MiB VMEM.
        raise ValueError(
            f"hidden_dim={H} exceeds the resident-weight VMEM budget on this chip")

    if tb is None:
        tb = _choose_tb(B, H, phys)
    tb = max(8, _round_up(min(tb, _round_up(B, 8)), 8))

    Bp = _round_up(B, tb)
    x_in = jnp.pad(x, ((0, Bp - B), (0, 0))) if Bp != B else x
    grid = (Bp // tb,)

    def run(use_buffered):
        est = _vmem_bytes_estimate(tb, H, x_itemsize, w_itemsize)
        if not use_buffered:
            est += 2 * H * H2 * w_itemsize       # weights double-buffered in fallback
        vmem_limit = int(max(8 << 20, min(est + (4 << 20), phys - (4 << 20))))

        row_spec = pl.BlockSpec((tb, H), lambda i: (i, 0))

        def const(shape):
            idx = lambda i: tuple(0 for _ in shape)
            if use_buffered:
                # Grid-invariant inputs: single-buffer them (no re-DMA across steps).
                return pl.BlockSpec(shape, idx, pipeline_mode=pl.Buffered(1))
            return pl.BlockSpec(shape, idx)

        return pl.pallas_call(
            _residual_block_kernel,
            out_shape=jax.ShapeDtypeStruct((Bp, H), x.dtype),
            grid_spec=pltpu.PrefetchScalarGridSpec(
                num_scalar_prefetch=0,
                grid=grid,
                in_specs=[
                    row_spec,          # x tile
                    const((1, H)),     # ln1 gamma
                    const((1, H)),     # ln1 beta
                    const((H, H2)),    # w1
                    const((1, H2)),    # b1
                    const((1, H2)),    # ln2 gamma
                    const((1, H2)),    # ln2 beta
                    const((H2, H)),    # w2
                    const((1, H)),     # b2
                ],
                out_specs=row_spec,
            ),
            compiler_params=pltpu.CompilerParams(
                dimension_semantics=("parallel",),
                vmem_limit_bytes=vmem_limit,
            ),
        )(
            x_in,
            params["ln1_w"], params["ln1_b"], w1, params["b1"],
            params["ln2_w"], params["ln2_b"], w2, params["b2"],
        )

    try:
        out = run(True)
    except Exception:
        # Fallback for jax versions without pipeline_mode / Buffered(1) support.
        out = run(False)

    return out[:B] if Bp != B else out


def init_params(key, hidden_dim, weight_dtype=jnp.bfloat16):
    """Deterministic synthetic parameters matching the PyTorch module's shapes."""
    H, H2 = hidden_dim, 2 * hidden_dim
    k1, k2, k3, k4 = jax.random.split(key, 4)
    # PyTorch-Linear-style uniform(-1/sqrt(fan_in), 1/sqrt(fan_in)) init.
    lim1 = 1.0 / (H ** 0.5)
    lim2 = 1.0 / (H2 ** 0.5)
    return {
        "ln1_w": jnp.ones((1, H), jnp.float32),
        "ln1_b": jnp.zeros((1, H), jnp.float32),
        # stored as (in, out) so the kernel does h @ w directly; bf16 for the MXU
        "w1": jax.random.uniform(k1, (H, H2), jnp.float32, -lim1, lim1).astype(weight_dtype),
        "b1": jax.random.uniform(k2, (1, H2), jnp.float32, -lim1, lim1),
        "ln2_w": jnp.ones((1, H2), jnp.float32),
        "ln2_b": jnp.zeros((1, H2), jnp.float32),
        "w2": jax.random.uniform(k3, (H2, H), jnp.float32, -lim2, lim2).astype(weight_dtype),
        "b2": jax.random.uniform(k4, (1, H), jnp.float32, -lim2, lim2),
    }


def residual_block_ref(x, params):
    """Pure-JAX reference: standard two-pass LayerNorm (f32), bf16 matmul inputs."""
    def ln(v, g, b):
        m = jnp.mean(v, axis=-1, keepdims=True)
        var = jnp.mean((v - m) ** 2, axis=-1, keepdims=True)
        return (v - m) * lax.rsqrt(var + LN_EPS) * g + b

    w1 = params["w1"].astype(jnp.bfloat16)
    w2 = params["w2"].astype(jnp.bfloat16)
    residual = x
    h = ln(x, params["ln1_w"], params["ln1_b"])
    h = jnp.dot(h.astype(w1.dtype), w1, preferred_element_type=jnp.float32) + params["b1"]
    h = jnp.maximum(h, 0.0)
    h = ln(h, params["ln2_w"], params["ln2_b"])
    h = jnp.dot(h.astype(w2.dtype), w2, preferred_element_type=jnp.float32) + params["b2"]
    return jnp.maximum(h + residual, 0.0)


if __name__ == "__main__":
    B, H = 16, 32
    key = jax.random.PRNGKey(0)
    kx, kp = jax.random.split(key)
    x = jax.random.normal(kx, (B, H), jnp.float32)
    params = init_params(kp, H)

    # Default heuristic -> tb=8, grid=(2,): exercises the batch-tiled pipeline.
    out = jax.block_until_ready(residual_block(x, params))
    # tb=16 -> grid=(1,) with the in-kernel 2x row-chunk unroll active.
    out_chunked = jax.block_until_ready(residual_block(x, params, tb=16))

    ref = residual_block_ref(x, params)
    assert out.shape == (B, H)
    err1 = float(jnp.max(jnp.abs(out - ref)))
    err2 = float(jnp.max(jnp.abs(out_chunked - ref)))
    assert jnp.allclose(out, ref, atol=2e-2, rtol=2e-2), err1
    assert jnp.allclose(out_chunked, ref, atol=2e-2, rtol=2e-2), err2
    print("KERNEL_OK")
</pallas_src>

<mosaic_0001>
module attributes {stable_mosaic.version = 11 : i64} {
  func.func @_residual_block_kernel(%arg0: i32, %arg1: memref<8x32xf32, #tpu.memory_space<vmem>>, %arg2: memref<1x32xf32, #tpu.memory_space<vmem>>, %arg3: memref<1x32xf32, #tpu.memory_space<vmem>>, %arg4: memref<32x64xbf16, #tpu.memory_space<vmem>>, %arg5: memref<1x64xf32, #tpu.memory_space<vmem>>, %arg6: memref<1x64xf32, #tpu.memory_space<vmem>>, %arg7: memref<1x64xf32, #tpu.memory_space<vmem>>, %arg8: memref<64x32xbf16, #tpu.memory_space<vmem>>, %arg9: memref<1x32xf32, #tpu.memory_space<vmem>>, %arg10: memref<8x32xf32, #tpu.memory_space<vmem>>) attributes {dimension_semantics = [#tpu.dimension_semantics<parallel>], iteration_bounds = array<i64: 2>, scalar_prefetch = 0 : i64, scratch_operands = 0 : i64, tpu.core_type = #tpu.core_type<tc>, window_params = [{transform_indices = @transform_0, window_bounds = array<i64: 8, 32>}, {pipeline_mode = #tpu.pipeline_mode<synchronous>, transform_indices = @transform_1, window_bounds = array<i64: 1, 32>}, {pipeline_mode = #tpu.pipeline_mode<synchronous>, transform_indices = @transform_2, window_bounds = array<i64: 1, 32>}, {pipeline_mode = #tpu.pipeline_mode<synchronous>, transform_indices = @transform_3, window_bounds = array<i64: 32, 64>}, {pipeline_mode = #tpu.pipeline_mode<synchronous>, transform_indices = @transform_4, window_bounds = array<i64: 1, 64>}, {pipeline_mode = #tpu.pipeline_mode<synchronous>, transform_indices = @transform_5, window_bounds = array<i64: 1, 64>}, {pipeline_mode = #tpu.pipeline_mode<synchronous>, transform_indices = @transform_6, window_bounds = array<i64: 1, 64>}, {pipeline_mode = #tpu.pipeline_mode<synchronous>, transform_indices = @transform_7, window_bounds = array<i64: 64, 32>}, {pipeline_mode = #tpu.pipeline_mode<synchronous>, transform_indices = @transform_8, window_bounds = array<i64: 1, 32>}, {transform_indices = @transform_9, window_bounds = array<i64: 8, 32>}]} {
    %c0 = arith.constant 0 : index
    %c0_0 = arith.constant 0 : index
    %0 = vector.load %arg2[%c0, %c0_0] : memref<1x32xf32, #tpu.memory_space<vmem>>, vector<1x32xf32>
    %c0_1 = arith.constant 0 : index
    %c0_2 = arith.constant 0 : index
    %1 = vector.load %arg3[%c0_1, %c0_2] : memref<1x32xf32, #tpu.memory_space<vmem>>, vector<1x32xf32>
    %c0_3 = arith.constant 0 : index
    %c0_4 = arith.constant 0 : index
    %2 = vector.load %arg5[%c0_3, %c0_4] : memref<1x64xf32, #tpu.memory_space<vmem>>, vector<1x64xf32>
    %c0_5 = arith.constant 0 : index
    %c0_6 = arith.constant 0 : index
    %3 = vector.load %arg6[%c0_5, %c0_6] : memref<1x64xf32, #tpu.memory_space<vmem>>, vector<1x64xf32>
    %c0_7 = arith.constant 0 : index
    %c0_8 = arith.constant 0 : index
    %4 = vector.load %arg7[%c0_7, %c0_8] : memref<1x64xf32, #tpu.memory_space<vmem>>, vector<1x64xf32>
    %c0_9 = arith.constant 0 : index
    %c0_10 = arith.constant 0 : index
    %5 = vector.load %arg9[%c0_9, %c0_10] : memref<1x32xf32, #tpu.memory_space<vmem>>, vector<1x32xf32>
    %c0_11 = arith.constant 0 : index
    %c0_12 = arith.constant 0 : index
    %6 = vector.load %arg4[%c0_11, %c0_12] : memref<32x64xbf16, #tpu.memory_space<vmem>>, vector<32x64xbf16>
    %c0_13 = arith.constant 0 : index
    %c0_14 = arith.constant 0 : index
    %7 = vector.load %arg8[%c0_13, %c0_14] : memref<64x32xbf16, #tpu.memory_space<vmem>>, vector<64x32xbf16>
    %c0_15 = arith.constant 0 : index
    %c0_16 = arith.constant 0 : index
    %8 = vector.load %arg1[%c0_15, %c0_16] : memref<8x32xf32, #tpu.memory_space<vmem>>, vector<8x32xf32>
    %cst = arith.constant dense<0.000000e+00> : vector<8xf32>
    %9 = vector.multi_reduction <add>, %8, %cst [1] : vector<8x32xf32> to vector<8xf32>
    %10 = vector.shape_cast %9 : vector<8xf32> to vector<8x1xf32>
    %11 = arith.mulf %8, %8 : vector<8x32xf32>
    %cst_17 = arith.constant dense<0.000000e+00> : vector<8xf32>
    %12 = vector.multi_reduction <add>, %11, %cst_17 [1] : vector<8x32xf32> to vector<8xf32>
    %13 = vector.shape_cast %12 : vector<8xf32> to vector<8x1xf32>
    %cst_18 = arith.constant 3.125000e-02 : f32
    %14 = vector.broadcast %cst_18 : f32 to vector<8x1xf32>
    %15 = arith.mulf %10, %14 : vector<8x1xf32>
    %cst_19 = arith.constant 3.125000e-02 : f32
    %16 = vector.broadcast %cst_19 : f32 to vector<8x1xf32>
    %17 = arith.mulf %13, %16 : vector<8x1xf32>
    %18 = arith.mulf %15, %15 : vector<8x1xf32>
    %19 = arith.subf %17, %18 : vector<8x1xf32>
    %cst_20 = arith.constant 0.000000e+00 : f32
    %20 = vector.broadcast %cst_20 : f32 to vector<8x1xf32>
    %21 = arith.maximumf %19, %20 : vector<8x1xf32>
    %cst_21 = arith.constant 9.99999974E-6 : f32
    %22 = vector.broadcast %cst_21 : f32 to vector<8x1xf32>
    %23 = arith.addf %21, %22 : vector<8x1xf32>
    %24 = math.rsqrt %23 : vector<8x1xf32>
    %25 = vector.broadcast %24 : vector<8x1xf32> to vector<8x32xf32>
    %26 = vector.broadcast %0 : vector<1x32xf32> to vector<8x32xf32>
    %27 = arith.mulf %25, %26 : vector<8x32xf32>
    %28 = arith.mulf %8, %27 : vector<8x32xf32>
    %29 = vector.broadcast %15 : vector<8x1xf32> to vector<8x32xf32>
    %30 = arith.mulf %29, %27 : vector<8x32xf32>
    %31 = vector.broadcast %1 : vector<1x32xf32> to vector<8x32xf32>
    %32 = arith.subf %31, %30 : vector<8x32xf32>
    %33 = arith.addf %28, %32 : vector<8x32xf32>
    %34 = arith.truncf %33 : vector<8x32xf32> to vector<8x32xbf16>
    %cst_22 = arith.constant dense<0.000000e+00> : vector<8x64xf32>
    %35 = tpu.matmul %34, %6, %cst_22 {dimension_numbers = #tpu.dot_dimension_numbers<[1], [0], [0], [1], [0, 0, 1, 1], [], []>} : vector<8x32xbf16>, vector<32x64xbf16>, vector<8x64xf32> -> vector<8x64xf32>
    %36 = vector.broadcast %2 : vector<1x64xf32> to vector<8x64xf32>
    %37 = arith.addf %35, %36 : vector<8x64xf32>
    %cst_23 = arith.constant 0.000000e+00 : f32
    %38 = vector.broadcast %cst_23 : f32 to vector<8x64xf32>
    %39 = arith.maximumf %37, %38 : vector<8x64xf32>
    %cst_24 = arith.constant dense<0.000000e+00> : vector<8xf32>
    %40 = vector.multi_reduction <add>, %39, %cst_24 [1] : vector<8x64xf32> to vector<8xf32>
    %41 = vector.shape_cast %40 : vector<8xf32> to vector<8x1xf32>
    %42 = arith.mulf %39, %39 : vector<8x64xf32>
    %cst_25 = arith.constant dense<0.000000e+00> : vector<8xf32>
    %43 = vector.multi_reduction <add>, %42, %cst_25 [1] : vector<8x64xf32> to vector<8xf32>
    %44 = vector.shape_cast %43 : vector<8xf32> to vector<8x1xf32>
    %cst_26 = arith.constant 1.562500e-02 : f32
    %45 = vector.broadcast %cst_26 : f32 to vector<8x1xf32>
    %46 = arith.mulf %41, %45 : vector<8x1xf32>
    %cst_27 = arith.constant 1.562500e-02 : f32
    %47 = vector.broadcast %cst_27 : f32 to vector<8x1xf32>
    %48 = arith.mulf %44, %47 : vector<8x1xf32>
    %49 = arith.mulf %46, %46 : vector<8x1xf32>
    %50 = arith.subf %48, %49 : vector<8x1xf32>
    %cst_28 = arith.constant 0.000000e+00 : f32
    %51 = vector.broadcast %cst_28 : f32 to vector<8x1xf32>
    %52 = arith.maximumf %50, %51 : vector<8x1xf32>
    %cst_29 = arith.constant 9.99999974E-6 : f32
    %53 = vector.broadcast %cst_29 : f32 to vector<8x1xf32>
    %54 = arith.addf %52, %53 : vector<8x1xf32>
    %55 = math.rsqrt %54 : vector<8x1xf32>
    %56 = vector.broadcast %55 : vector<8x1xf32> to vector<8x64xf32>
    %57 = vector.broadcast %3 : vector<1x64xf32> to vector<8x64xf32>
    %58 = arith.mulf %56, %57 : vector<8x64xf32>
    %59 = arith.mulf %39, %58 : vector<8x64xf32>
    %60 = vector.broadcast %46 : vector<8x1xf32> to vector<8x64xf32>
    %61 = arith.mulf %60, %58 : vector<8x64xf32>
    %62 = vector.broadcast %4 : vector<1x64xf32> to vector<8x64xf32>
    %63 = arith.subf %62, %61 : vector<8x64xf32>
    %64 = arith.addf %59, %63 : vector<8x64xf32>
    %65 = arith.truncf %64 : vector<8x64xf32> to vector<8x64xbf16>
    %cst_30 = arith.constant dense<0.000000e+00> : vector<8x32xf32>
    %66 = tpu.matmul %65, %7, %cst_30 {dimension_numbers = #tpu.dot_dimension_numbers<[1], [0], [0], [1], [0, 0, 1, 1], [], []>} : vector<8x64xbf16>, vector<64x32xbf16>, vector<8x32xf32> -> vector<8x32xf32>
    %67 = vector.broadcast %5 : vector<1x32xf32> to vector<8x32xf32>
    %68 = arith.addf %66, %67 : vector<8x32xf32>
    %69 = arith.addf %68, %8 : vector<8x32xf32>
    %cst_31 = arith.constant 0.000000e+00 : f32
    %70 = vector.broadcast %cst_31 : f32 to vector<8x32xf32>
    %71 = arith.maximumf %69, %70 : vector<8x32xf32>
    %c0_32 = arith.constant 0 : index
    %c0_33 = arith.constant 0 : index
    %72 = vector.load %arg10[%c0_32, %c0_33] : memref<8x32xf32, #tpu.memory_space<vmem>>, vector<8x32xf32>
    tpu.vector_store %arg10[%c0_32, %c0_33], %71 {strides = array<i32>} : memref<8x32xf32, #tpu.memory_space<vmem>>, vector<8x32xf32>,
    return
  }
  func.func @transform_0(%arg0: i32) -> (i32, i32) {
    %c0_i32 = arith.constant 0 : i32
    %c0_i32_0 = arith.constant 0 : i32
    return %arg0, %c0_i32 : i32, i32
  }
  func.func @transform_1(%arg0: i32) -> (i32, i32) {
    %c0_i32 = arith.constant 0 : i32
    %c0_i32_0 = arith.constant 0 : i32
    %c0_i32_1 = arith.constant 0 : i32
    return %c0_i32, %c0_i32_0 : i32, i32
  }
  func.func @transform_2(%arg0: i32) -> (i32, i32) {
    %c0_i32 = arith.constant 0 : i32
    %c0_i32_0 = arith.constant 0 : i32
    %c0_i32_1 = arith.constant 0 : i32
    return %c0_i32, %c0_i32_0 : i32, i32
  }
  func.func @transform_3(%arg0: i32) -> (i32, i32) {
    %c0_i32 = arith.constant 0 : i32
    %c0_i32_0 = arith.constant 0 : i32
    %c0_i32_1 = arith.constant 0 : i32
    return %c0_i32, %c0_i32_0 : i32, i32
  }
  func.func @transform_4(%arg0: i32) -> (i32, i32) {
    %c0_i32 = arith.constant 0 : i32
    %c0_i32_0 = arith.constant 0 : i32
    %c0_i32_1 = arith.constant 0 : i32
    return %c0_i32, %c0_i32_0 : i32, i32
  }
  func.func @transform_5(%arg0: i32) -> (i32, i32) {
    %c0_i32 = arith.constant 0 : i32
    %c0_i32_0 = arith.constant 0 : i32
    %c0_i32_1 = arith.constant 0 : i32
    return %c0_i32, %c0_i32_0 : i32, i32
  }
  func.func @transform_6(%arg0: i32) -> (i32, i32) {
    %c0_i32 = arith.constant 0 : i32
    %c0_i32_0 = arith.constant 0 : i32
    %c0_i32_1 = arith.constant 0 : i32
    return %c0_i32, %c0_i32_0 : i32, i32
  }
  func.func @transform_7(%arg0: i32) -> (i32, i32) {
    %c0_i32 = arith.constant 0 : i32
    %c0_i32_0 = arith.constant 0 : i32
    %c0_i32_1 = arith.constant 0 : i32
    return %c0_i32, %c0_i32_0 : i32, i32
  }
  func.func @transform_8(%arg0: i32) -> (i32, i32) {
    %c0_i32 = arith.constant 0 : i32
    %c0_i32_0 = arith.constant 0 : i32
    %c0_i32_1 = arith.constant 0 : i32
    return %c0_i32, %c0_i32_0 : i32, i32
  }
  func.func @transform_9(%arg0: i32) -> (i32, i32) {
    %c0_i32 = arith.constant 0 : i32
    %c0_i32_0 = arith.constant 0 : i32
    return %arg0, %c0_i32 : i32, i32
  }
}

module attributes {stable_mosaic.version = 11 : i64} {
  func.func @_residual_block_kernel(%arg0: i32, %arg1: memref<8x32xf32, #tpu.memory_space<vmem>>, %arg2: memref<1x32xf32, #tpu.memory_space<vmem>>, %arg3: memref<1x32xf32, #tpu.memory_space<vmem>>, %arg4: memref<32x64xbf16, #tpu.memory_space<vmem>>, %arg5: memref<1x64xf32, #tpu.memory_space<vmem>>, %arg6: memref<1x64xf32, #tpu.memory_space<vmem>>, %arg7: memref<1x64xf32, #tpu.memory_space<vmem>>, %arg8: memref<64x32xbf16, #tpu.memory_space<vmem>>, %arg9: memref<1x32xf32, #tpu.memory_space<vmem>>, %arg10: memref<8x32xf32, #tpu.memory_space<vmem>>) attributes {dimension_semantics = [#tpu.dimension_semantics<parallel>], iteration_bounds = array<i64: 2>, scalar_prefetch = 0 : i64, scratch_operands = 0 : i64, tpu.core_type = #tpu.core_type<tc>, window_params = [{transform_indices = @transform_0, window_bounds = array<i64: 8, 32>}, {pipeline_mode = #tpu.pipeline_mode<synchronous>, transform_indices = @transform_1, window_bounds = array<i64: 1, 32>}, {pipeline_mode = #tpu.pipeline_mode<synchronous>, transform_indices = @transform_2, window_bounds = array<i64: 1, 32>}, {pipeline_mode = #tpu.pipeline_mode<synchronous>, transform_indices = @transform_3, window_bounds = array<i64: 32, 64>}, {pipeline_mode = #tpu.pipeline_mode<synchronous>, transform_indices = @transform_4, window_bounds = array<i64: 1, 64>}, {pipeline_mode = #tpu.pipeline_mode<synchronous>, transform_indices = @transform_5, window_bounds = array<i64: 1, 64>}, {pipeline_mode = #tpu.pipeline_mode<synchronous>, transform_indices = @transform_6, window_bounds = array<i64: 1, 64>}, {pipeline_mode = #tpu.pipeline_mode<synchronous>, transform_indices = @transform_7, window_bounds = array<i64: 64, 32>}, {pipeline_mode = #tpu.pipeline_mode<synchronous>, transform_indices = @transform_8, window_bounds = array<i64: 1, 32>}, {transform_indices = @transform_9, window_bounds = array<i64: 8, 32>}]} {
    %c0 = arith.constant 0 : index
    %c0_0 = arith.constant 0 : index
    %0 = vector.load %arg2[%c0, %c0_0] : memref<1x32xf32, #tpu.memory_space<vmem>>, vector<1x32xf32>
    %c0_1 = arith.constant 0 : index
    %c0_2 = arith.constant 0 : index
    %1 = vector.load %arg3[%c0_1, %c0_2] : memref<1x32xf32, #tpu.memory_space<vmem>>, vector<1x32xf32>
    %c0_3 = arith.constant 0 : index
    %c0_4 = arith.constant 0 : index
    %2 = vector.load %arg5[%c0_3, %c0_4] : memref<1x64xf32, #tpu.memory_space<vmem>>, vector<1x64xf32>
    %c0_5 = arith.constant 0 : index
    %c0_6 = arith.constant 0 : index
    %3 = vector.load %arg6[%c0_5, %c0_6] : memref<1x64xf32, #tpu.memory_space<vmem>>, vector<1x64xf32>
    %c0_7 = arith.constant 0 : index
    %c0_8 = arith.constant 0 : index
    %4 = vector.load %arg7[%c0_7, %c0_8] : memref<1x64xf32, #tpu.memory_space<vmem>>, vector<1x64xf32>
    %c0_9 = arith.constant 0 : index
    %c0_10 = arith.constant 0 : index
    %5 = vector.load %arg9[%c0_9, %c0_10] : memref<1x32xf32, #tpu.memory_space<vmem>>, vector<1x32xf32>
    %c0_11 = arith.constant 0 : index
    %c0_12 = arith.constant 0 : index
    %6 = vector.load %arg4[%c0_11, %c0_12] : memref<32x64xbf16, #tpu.memory_space<vmem>>, vector<32x64xbf16>
    %c0_13 = arith.constant 0 : index
    %c0_14 = arith.constant 0 : index
    %7 = vector.load %arg8[%c0_13, %c0_14] : memref<64x32xbf16, #tpu.memory_space<vmem>>, vector<64x32xbf16>
    %c0_15 = arith.constant 0 : index
    %c0_16 = arith.constant 0 : index
    %8 = vector.load %arg1[%c0_15, %c0_16] : memref<8x32xf32, #tpu.memory_space<vmem>>, vector<8x32xf32>
    %cst = arith.constant dense<0.000000e+00> : vector<8xf32>
    %9 = vector.multi_reduction <add>, %8, %cst [1] : vector<8x32xf32> to vector<8xf32>
    %10 = vector.shape_cast %9 : vector<8xf32> to vector<8x1xf32>
    %11 = arith.mulf %8, %8 : vector<8x32xf32>
    %cst_17 = arith.constant dense<0.000000e+00> : vector<8xf32>
    %12 = vector.multi_reduction <add>, %11, %cst_17 [1] : vector<8x32xf32> to vector<8xf32>
    %13 = vector.shape_cast %12 : vector<8xf32> to vector<8x1xf32>
    %cst_18 = arith.constant 3.125000e-02 : f32
    %14 = vector.broadcast %cst_18 : f32 to vector<8x1xf32>
    %15 = arith.mulf %10, %14 : vector<8x1xf32>
    %cst_19 = arith.constant 3.125000e-02 : f32
    %16 = vector.broadcast %cst_19 : f32 to vector<8x1xf32>
    %17 = arith.mulf %13, %16 : vector<8x1xf32>
    %18 = arith.mulf %15, %15 : vector<8x1xf32>
    %19 = arith.subf %17, %18 : vector<8x1xf32>
    %cst_20 = arith.constant 0.000000e+00 : f32
    %20 = vector.broadcast %cst_20 : f32 to vector<8x1xf32>
    %21 = arith.maximumf %19, %20 : vector<8x1xf32>
    %cst_21 = arith.constant 9.99999974E-6 : f32
    %22 = vector.broadcast %cst_21 : f32 to vector<8x1xf32>
    %23 = arith.addf %21, %22 : vector<8x1xf32>
    %24 = math.rsqrt %23 : vector<8x1xf32>
    %25 = vector.broadcast %24 : vector<8x1xf32> to vector<8x32xf32>
    %26 = vector.broadcast %0 : vector<1x32xf32> to vector<8x32xf32>
    %27 = arith.mulf %25, %26 : vector<8x32xf32>
    %28 = arith.mulf %8, %27 : vector<8x32xf32>
    %29 = vector.broadcast %15 : vector<8x1xf32> to vector<8x32xf32>
    %30 = arith.mulf %29, %27 : vector<8x32xf32>
    %31 = vector.broadcast %1 : vector<1x32xf32> to vector<8x32xf32>
    %32 = arith.subf %31, %30 : vector<8x32xf32>
    %33 = arith.addf %28, %32 : vector<8x32xf32>
    %34 = arith.truncf %33 : vector<8x32xf32> to vector<8x32xbf16>
    %cst_22 = arith.constant dense<0.000000e+00> : vector<8x64xf32>
    %35 = tpu.matmul %34, %6, %cst_22 {dimension_numbers = #tpu.dot_dimension_numbers<[1], [0], [0], [1], [0, 0, 1, 1], [], []>} : vector<8x32xbf16>, vector<32x64xbf16>, vector<8x64xf32> -> vector<8x64xf32>
    %36 = vector.broadcast %2 : vector<1x64xf32> to vector<8x64xf32>
    %37 = arith.addf %35, %36 : vector<8x64xf32>
    %cst_23 = arith.constant 0.000000e+00 : f32
    %38 = vector.broadcast %cst_23 : f32 to vector<8x64xf32>
    %39 = arith.maximumf %37, %38 : vector<8x64xf32>
    %cst_24 = arith.constant dense<0.000000e+00> : vector<8xf32>
    %40 = vector.multi_reduction <add>, %39, %cst_24 [1] : vector<8x64xf32> to vector<8xf32>
    %41 = vector.shape_cast %40 : vector<8xf32> to vector<8x1xf32>
    %42 = arith.mulf %39, %39 : vector<8x64xf32>
    %cst_25 = arith.constant dense<0.000000e+00> : vector<8xf32>
    %43 = vector.multi_reduction <add>, %42, %cst_25 [1] : vector<8x64xf32> to vector<8xf32>
    %44 = vector.shape_cast %43 : vector<8xf32> to vector<8x1xf32>
    %cst_26 = arith.constant 1.562500e-02 : f32
    %45 = vector.broadcast %cst_26 : f32 to vector<8x1xf32>
    %46 = arith.mulf %41, %45 : vector<8x1xf32>
    %cst_27 = arith.constant 1.562500e-02 : f32
    %47 = vector.broadcast %cst_27 : f32 to vector<8x1xf32>
    %48 = arith.mulf %44, %47 : vector<8x1xf32>
    %49 = arith.mulf %46, %46 : vector<8x1xf32>
    %50 = arith.subf %48, %49 : vector<8x1xf32>
    %cst_28 = arith.constant 0.000000e+00 : f32
    %51 = vector.broadcast %cst_28 : f32 to vector<8x1xf32>
    %52 = arith.maximumf %50, %51 : vector<8x1xf32>
    %cst_29 = arith.constant 9.99999974E-6 : f32
    %53 = vector.broadcast %cst_29 : f32 to vector<8x1xf32>
    %54 = arith.addf %52, %53 : vector<8x1xf32>
    %55 = math.rsqrt %54 : vector<8x1xf32>
    %56 = vector.broadcast %55 : vector<8x1xf32> to vector<8x64xf32>
    %57 = vector.broadcast %3 : vector<1x64xf32> to vector<8x64xf32>
    %58 = arith.mulf %56, %57 : vector<8x64xf32>
    %59 = arith.mulf %39, %58 : vector<8x64xf32>
    %60 = vector.broadcast %46 : vector<8x1xf32> to vector<8x64xf32>
    %61 = arith.mulf %60, %58 : vector<8x64xf32>
    %62 = vector.broadcast %4 : vector<1x64xf32> to vector<8x64xf32>
    %63 = arith.subf %62, %61 : vector<8x64xf32>
    %64 = arith.addf %59, %63 : vector<8x64xf32>
    %65 = arith.truncf %64 : vector<8x64xf32> to vector<8x64xbf16>
    %cst_30 = arith.constant dense<0.000000e+00> : vector<8x32xf32>
    %66 = tpu.matmul %65, %7, %cst_30 {dimension_numbers = #tpu.dot_dimension_numbers<[1], [0], [0], [1], [0, 0, 1, 1], [], []>} : vector<8x64xbf16>, vector<64x32xbf16>, vector<8x32xf32> -> vector<8x32xf32>
    %67 = vector.broadcast %5 : vector<1x32xf32> to vector<8x32xf32>
    %68 = arith.addf %66, %67 : vector<8x32xf32>
    %69 = arith.addf %68, %8 : vector<8x32xf32>
    %cst_31 = arith.constant 0.000000e+00 : f32
    %70 = vector.broadcast %cst_31 : f32 to vector<8x32xf32>
    %71 = arith.maximumf %69, %70 : vector<8x32xf32>
    %c0_32 = arith.constant 0 : index
    %c0_33 = arith.constant 0 : index
    %72 = vector.load %arg10[%c0_32, %c0_33] : memref<8x32xf32, #tpu.memory_space<vmem>>, vector<8x32xf32>
    tpu.vector_store %arg10[%c0_32, %c0_33], %71 {strides = array<i32>} : memref<8x32xf32, #tpu.memory_space<vmem>>, vector<8x32xf32>,
    return
  }
  func.func @transform_0(%arg0: i32) -> (i32, i32) {
    %c0_i32 = arith.constant 0 : i32
    %c0_i32_0 = arith.constant 0 : i32
    return %arg0, %c0_i32 : i32, i32
  }
  func.func @transform_1(%arg0: i32) -> (i32, i32) {
    %c0_i32 = arith.constant 0 : i32
    %c0_i32_0 = arith.constant 0 : i32
    %c0_i32_1 = arith.constant 0 : i32
    return %c0_i32, %c0_i32_0 : i32, i32
  }
  func.func @transform_2(%arg0: i32) -> (i32, i32) {
    %c0_i32 = arith.constant 0 : i32
    %c0_i32_0 = arith.constant 0 : i32
    %c0_i32_1 = arith.constant 0 : i32
    return %c0_i32, %c0_i32_0 : i32, i32
  }
  func.func @transform_3(%arg0: i32) -> (i32, i32) {
    %c0_i32 = arith.constant 0 : i32
    %c0_i32_0 = arith.constant 0 : i32
    %c0_i32_1 = arith.constant 0 : i32
    return %c0_i32, %c0_i32_0 : i32, i32
  }
  func.func @transform_4(%arg0: i32) -> (i32, i32) {
    %c0_i32 = arith.constant 0 : i32
    %c0_i32_0 = arith.constant 0 : i32
    %c0_i32_1 = arith.constant 0 : i32
    return %c0_i32, %c0_i32_0 : i32, i32
  }
  func.func @transform_5(%arg0: i32) -> (i32, i32) {
    %c0_i32 = arith.constant 0 : i32
    %c0_i32_0 = arith.constant 0 : i32
    %c0_i32_1 = arith.constant 0 : i32
    return %c0_i32, %c0_i32_0 : i32, i32
  }
  func.func @transform_6(%arg0: i32) -> (i32, i32) {
    %c0_i32 = arith.constant 0 : i32
    %c0_i32_0 = arith.constant 0 : i32
    %c0_i32_1 = arith.constant 0 : i32
    return %c0_i32, %c0_i32_0 : i32, i32
  }
  func.func @transform_7(%arg0: i32) -> (i32, i32) {
    %c0_i32 = arith.constant 0 : i32
    %c0_i32_0 = arith.constant 0 : i32
    %c0_i32_1 = arith.constant 0 : i32
    return %c0_i32, %c0_i32_0 : i32, i32
  }
  func.func @transform_8(%arg0: i32) -> (i32, i32) {
    %c0_i32 = arith.constant 0 : i32
    %c0_i32_0 = arith.constant 0 : i32
    %c0_i32_1 = arith.constant 0 : i32
    return %c0_i32, %c0_i32_0 : i32, i32
  }
  func.func @transform_9(%arg0: i32) -> (i32, i32) {
    %c0_i32 = arith.constant 0 : i32
    %c0_i32_0 = arith.constant 0 : i32
    return %arg0, %c0_i32 : i32, i32
  }
}

</mosaic_0001>

<llo_original>
// kernel: tpu_custom_call.1
$region0: #{tpu_custom_call.1}
  #allocation0 [shape = 'u32[]', space=smem, size = 0x4, offset = 0x4, fixed_abs, tag = 'smem constant byte address 0x4 - core index']
  #allocation1 [shape = 'u32[144,128]{1,0:T(1,128)}', space=vmem, size = 0x12000, scoped, tag = 'internal scratch']
  %s0 = inlined_call_operand.vmem [shape: f32[16,32], index: 0, kind: input, shape index: {}]
  %s1 = inlined_call_operand.vmem [shape: f32[1,32], index: 1, kind: input, shape index: {}]
  %s2 = inlined_call_operand.vmem [shape: f32[1,32], index: 2, kind: input, shape index: {}]
  %s3 = inlined_call_operand.vmem [shape: bf16[32,64], index: 3, kind: input, shape index: {}]
  %s4 = inlined_call_operand.vmem [shape: f32[1,64], index: 4, kind: input, shape index: {}]
  %s5 = inlined_call_operand.vmem [shape: f32[1,64], index: 5, kind: input, shape index: {}]
  %s6 = inlined_call_operand.vmem [shape: f32[1,64], index: 6, kind: input, shape index: {}]
  %s7 = inlined_call_operand.vmem [shape: bf16[64,32], index: 7, kind: input, shape index: {}]
  %s8 = inlined_call_operand.vmem [shape: f32[1,32], index: 8, kind: input, shape index: {}]
  %s9 = inlined_call_operand.hbm [shape: f32[16,32], index: 9, kind: output, shape index: {}]
  %s10 = sld [smem:[#allocation0]]
  $region69: #{tpu_custom_call.1} parent=0
    _
  %s12 = ssub.s32 1, %s10
  %s13 = scalar_select 0, %s12, %s10
  $region1: #{tpu_custom_call.1} parent=0
    #allocation2 [shape = 'u8[8192]{0}', space=vmem, size = 0x2000, scoped, tag = 'output window, operand 0']
    #allocation3 [shape = 's32[2]{0}', space=sflag, size = 0x8, scoped, tag = 'scoped memory for tpu_custom_call.1']
    %14 = vsyncpa [#allocation3], 0
    %s15 = scalar_lea.sflag [#allocation3], 1
    %16 = vsyncpa %s15, 0
    loop: start=0, step=1, limit=4
    $region2: #{tpu_custom_call.1} parent=1 // loop_pre_header
      _
    $region3: #{tpu_custom_call.1} parent=1 // loop_header
      %s18 = sphi 0, %s22
      %p19 = scmp.ge.s32.totalorder %s18, 4
      %s28 = sphi 0, %s30
      %s31 = sphi 0, %s28
      %s32 = sphi 0, %s31
      %s48 = sphi 0, %s32
      %s52 = sphi 0, %s52
      %s54 = sphi 0, %s52
      %s55 = sphi 0, %s54
      %s69 = sphi 0, %s55
      %s73 = sphi 0, %s73
      %s75 = sphi 0, %s73
      %s76 = sphi 0, %s75
      %s90 = sphi 0, %s76
      %s94 = sphi 0, %s94
      %s96 = sphi 0, %s94
      %s97 = sphi 0, %s96
      %s111 = sphi 0, %s97
      %s115 = sphi 0, %s115
      %s117 = sphi 0, %s115
      %s118 = sphi 0, %s117
      %s132 = sphi 0, %s118
      %s136 = sphi 0, %s136
      %s138 = sphi 0, %s136
      %s139 = sphi 0, %s138
      %s153 = sphi 0, %s139
      %s157 = sphi 0, %s157
      %s159 = sphi 0, %s157
      %s160 = sphi 0, %s159
      %s174 = sphi 0, %s160
      %s178 = sphi 0, %s178
      %s180 = sphi 0, %s178
      %s181 = sphi 0, %s180
      %s195 = sphi 0, %s181
      %s199 = sphi 0, %s199
      %s201 = sphi 0, %s199
      %s202 = sphi 0, %s201
      %s216 = sphi 0, %s202
      %s222 = sphi 0, %s224
      %s225 = sphi 0, %s222
      %s226 = sphi 0, %s225
      %s242 = sphi 0, %s226
    $region4: #{tpu_custom_call.1} parent=1 // loop_header_branch
      %21 = sbr.rel (%p19) target = $region8
    $region5: #{tpu_custom_call.1} parent=1 // loop_body
      %s23 = ssub.s32 %s18, 1
      %s24 = ssub.s32 %s18, 2
      %s25 = sadd.s32 %s18, 1
      %s26 = ssub.s32 %s18, %s25
      %p27 = scmp.eq.s32.totalorder %s26, 0
      %s29 = sadd.s32 %s28, 1
      %s30 = scalar_select %p27, %s28, %s29
      %p33 = pneg %p27
      %p34 = scmp.eq.s32.totalorder %s18, 1
      %p35 = por %p33, %p34
      %p36 = scmp.ne.s32.totalorder %s28, %s31
      %p37 = scmp.eq.s32.totalorder %s18, 0
      %p38 = por %p36, %p37
      %p39 = scmp.ne.s32.totalorder %s28, %s31
      %p40 = scmp.eq.s32.totalorder %s23, 1
      %p41 = por %p39, %p40
      %p42 = scmp.ne.s32.totalorder %s31, %s32
      %p43 = scmp.eq.s32.totalorder %s23, 0
      %p44 = por %p42, %p43
      %p45 = scmp.ne.s32.totalorder %s31, %s32
      %p46 = scmp.eq.s32.totalorder %s24, 1
      %p47 = por %p45, %p46
      %p49 = scmp.ne.s32.totalorder %s32, %s48
      %p50 = scmp.eq.s32.totalorder %s24, 0
      %p51 = por %p49, %p50
      %s53 = sadd.s32 %s52, 1
      %p56 = scmp.eq.s32.totalorder %s18, 1
      %p57 = scmp.ne.s32.totalorder %s52, %s54
      %p58 = scmp.eq.s32.totalorder %s18, 0
      %p59 = por %p57, %p58
      %p60 = scmp.ne.s32.totalorder %s52, %s54
      %p61 = scmp.eq.s32.totalorder %s23, 1
      %p62 = por %p60, %p61
      %p63 = scmp.ne.s32.totalorder %s54, %s55
      %p64 = scmp.eq.s32.totalorder %s23, 0
      %p65 = por %p63, %p64
      %p66 = scmp.ne.s32.totalorder %s54, %s55
      %p67 = scmp.eq.s32.totalorder %s24, 1
      %p68 = por %p66, %p67
      %p70 = scmp.ne.s32.totalorder %s55, %s69
      %p71 = scmp.eq.s32.totalorder %s24, 0
      %p72 = por %p70, %p71
      %s74 = sadd.s32 %s73, 1
      %p77 = scmp.eq.s32.totalorder %s18, 1
      %p78 = scmp.ne.s32.totalorder %s73, %s75
      %p79 = scmp.eq.s32.totalorder %s18, 0
      %p80 = por %p78, %p79
      %p81 = scmp.ne.s32.totalorder %s73, %s75
      %p82 = scmp.eq.s32.totalorder %s23, 1
      %p83 = por %p81, %p82
      %p84 = scmp.ne.s32.totalorder %s75, %s76
      %p85 = scmp.eq.s32.totalorder %s23, 0
      %p86 = por %p84, %p85
      %p87 = scmp.ne.s32.totalorder %s75, %s76
      %p88 = scmp.eq.s32.totalorder %s24, 1
      %p89 = por %p87, %p88
      %p91 = scmp.ne.s32.totalorder %s76, %s90
      %p92 = scmp.eq.s32.totalorder %s24, 0
      %p93 = por %p91, %p92
      %s95 = sadd.s32 %s94, 1
      %p98 = scmp.eq.s32.totalorder %s18, 1
      %p99 = scmp.ne.s32.totalorder %s94, %s96
      %p100 = scmp.eq.s32.totalorder %s18, 0
      %p101 = por %p99, %p100
      %p102 = scmp.ne.s32.totalorder %s94, %s96
      %p103 = scmp.eq.s32.totalorder %s23, 1
      %p104 = por %p102, %p103
      %p105 = scmp.ne.s32.totalorder %s96, %s97
      %p106 = scmp.eq.s32.totalorder %s23, 0
      %p107 = por %p105, %p106
      %p108 = scmp.ne.s32.totalorder %s96, %s97
      %p109 = scmp.eq.s32.totalorder %s24, 1
      %p110 = por %p108, %p109
      %p112 = scmp.ne.s32.totalorder %s97, %s111
      %p113 = scmp.eq.s32.totalorder %s24, 0
      %p114 = por %p112, %p113
      %s116 = sadd.s32 %s115, 1
      %p119 = scmp.eq.s32.totalorder %s18, 1
      %p120 = scmp.ne.s32.totalorder %s115, %s117
      %p121 = scmp.eq.s32.totalorder %s18, 0
      %p122 = por %p120, %p121
      %p123 = scmp.ne.s32.totalorder %s115, %s117
      %p124 = scmp.eq.s32.totalorder %s23, 1
      %p125 = por %p123, %p124
      %p126 = scmp.ne.s32.totalorder %s117, %s118
      %p127 = scmp.eq.s32.totalorder %s23, 0
      %p128 = por %p126, %p127
      %p129 = scmp.ne.s32.totalorder %s117, %s118
      %p130 = scmp.eq.s32.totalorder %s24, 1
      %p131 = por %p129, %p130
      %p133 = scmp.ne.s32.totalorder %s118, %s132
      %p134 = scmp.eq.s32.totalorder %s24, 0
      %p135 = por %p133, %p134
      %s137 = sadd.s32 %s136, 1
      %p140 = scmp.eq.s32.totalorder %s18, 1
      %p141 = scmp.ne.s32.totalorder %s136, %s138
      %p142 = scmp.eq.s32.totalorder %s18, 0
      %p143 = por %p141, %p142
      %p144 = scmp.ne.s32.totalorder %s136, %s138
      %p145 = scmp.eq.s32.totalorder %s23, 1
      %p146 = por %p144, %p145
      %p147 = scmp.ne.s32.totalorder %s138, %s139
      %p148 = scmp.eq.s32.totalorder %s23, 0
      %p149 = por %p147, %p148
      %p150 = scmp.ne.s32.totalorder %s138, %s139
      %p151 = scmp.eq.s32.totalorder %s24, 1
      %p152 = por %p150, %p151
      %p154 = scmp.ne.s32.totalorder %s139, %s153
      %p155 = scmp.eq.s32.totalorder %s24, 0
      %p156 = por %p154, %p155
      %s158 = sadd.s32 %s157, 1
      %p161 = scmp.eq.s32.totalorder %s18, 1
      %p162 = scmp.ne.s32.totalorder %s157, %s159
      %p163 = scmp.eq.s32.totalorder %s18, 0
      %p164 = por %p162, %p163
      %p165 = scmp.ne.s32.totalorder %s157, %s159
      %p166 = scmp.eq.s32.totalorder %s23, 1
      %p167 = por %p165, %p166
      %p168 = scmp.ne.s32.totalorder %s159, %s160
      %p169 = scmp.eq.s32.totalorder %s23, 0
      %p170 = por %p168, %p169
      %p171 = scmp.ne.s32.totalorder %s159, %s160
      %p172 = scmp.eq.s32.totalorder %s24, 1
      %p173 = por %p171, %p172
      %p175 = scmp.ne.s32.totalorder %s160, %s174
      %p176 = scmp.eq.s32.totalorder %s24, 0
      %p177 = por %p175, %p176
      %s179 = sadd.s32 %s178, 1
      %p182 = scmp.eq.s32.totalorder %s18, 1
      %p183 = scmp.ne.s32.totalorder %s178, %s180
      %p184 = scmp.eq.s32.totalorder %s18, 0
      %p185 = por %p183, %p184
      %p186 = scmp.ne.s32.totalorder %s178, %s180
      %p187 = scmp.eq.s32.totalorder %s23, 1
      %p188 = por %p186, %p187
      %p189 = scmp.ne.s32.totalorder %s180, %s181
      %p190 = scmp.eq.s32.totalorder %s23, 0
      %p191 = por %p189, %p190
      %p192 = scmp.ne.s32.totalorder %s180, %s181
      %p193 = scmp.eq.s32.totalorder %s24, 1
      %p194 = por %p192, %p193
      %p196 = scmp.ne.s32.totalorder %s181, %s195
      %p197 = scmp.eq.s32.totalorder %s24, 0
      %p198 = por %p196, %p197
      %s200 = sadd.s32 %s199, 1
      %p203 = scmp.eq.s32.totalorder %s18, 1
      %p204 = scmp.ne.s32.totalorder %s199, %s201
      %p205 = scmp.eq.s32.totalorder %s18, 0
      %p206 = por %p204, %p205
      %p207 = scmp.ne.s32.totalorder %s199, %s201
      %p208 = scmp.eq.s32.totalorder %s23, 1
      %p209 = por %p207, %p208
      %p210 = scmp.ne.s32.totalorder %s201, %s202
      %p211 = scmp.eq.s32.totalorder %s23, 0
      %p212 = por %p210, %p211
      %p213 = scmp.ne.s32.totalorder %s201, %s202
      %p214 = scmp.eq.s32.totalorder %s24, 1
      %p215 = por %p213, %p214
      %p217 = scmp.ne.s32.totalorder %s202, %s216
      %p218 = scmp.eq.s32.totalorder %s24, 0
      %p219 = por %p217, %p218
      %s220 = ssub.s32 %s18, %s25
      %p221 = scmp.eq.s32.totalorder %s220, 0
      %s223 = sadd.s32 %s222, 1
      %s224 = scalar_select %p221, %s222, %s223
      %p227 = pneg %p221
      %p228 = scmp.eq.s32.totalorder %s18, 1
      %p229 = por %p227, %p228
      %p230 = scmp.ne.s32.totalorder %s222, %s225
      %p231 = scmp.eq.s32.totalorder %s18, 0
      %p232 = por %p230, %p231
      %p233 = scmp.ne.s32.totalorder %s222, %s225
      %p234 = scmp.eq.s32.totalorder %s23, 1
      %p235 = por %p233, %p234
      %p236 = scmp.ne.s32.totalorder %s225, %s226
      %p237 = scmp.eq.s32.totalorder %s23, 0
      %p238 = por %p236, %p237
      %p239 = scmp.ne.s32.totalorder %s225, %s226
      %p240 = scmp.eq.s32.totalorder %s24, 1
      %p241 = por %p239, %p240
      %p243 = scmp.ne.s32.totalorder %s226, %s242
      %p244 = scmp.eq.s32.totalorder %s24, 0
      %p245 = por %p243, %p244
      %p246 = scmp.le.s32.totalorder 1, %s18
      %p247 = scmp.lt.s32.totalorder %s18, 3
      %p248 = pnand %p246, %p247
      %p249 = pneg %p248
      // Predicated region
      $region9: #{tpu_custom_call.1} parent=5 // pred_check
        _
      $region10: #{tpu_custom_call.1} parent=5 // pred_check_branch
        %251 = sbr.rel (%p248) target = $region12
      $region11: #{tpu_custom_call.1} parent=5 // pred_region
        %s252 = ssub.s32 %s18, 1
        // Predicated region
        $region13: #{tpu_custom_call.1} parent=11 // pred_check
          %p253 = pneg %p65
        $region14: #{tpu_custom_call.1} parent=11 // pred_check_branch
          %255 = sbr.rel (%p253) target = $region16
        $region15: #{tpu_custom_call.1} parent=11 // pred_region
          _
        $region16: #{tpu_custom_call.1} parent=11 // pred_fallthru
          _
        // Predicated region
        $region17: #{tpu_custom_call.1} parent=11 // pred_check
          %p256 = pneg %p86
        $region18: #{tpu_custom_call.1} parent=11 // pred_check_branch
          %258 = sbr.rel (%p256) target = $region20
        $region19: #{tpu_custom_call.1} parent=11 // pred_region
          _
        $region20: #{tpu_custom_call.1} parent=11 // pred_fallthru
          _
        // Predicated region
        $region21: #{tpu_custom_call.1} parent=11 // pred_check
          %p259 = pneg %p107
        $region22: #{tpu_custom_call.1} parent=11 // pred_check_branch
          %261 = sbr.rel (%p259) target = $region24
        $region23: #{tpu_custom_call.1} parent=11 // pred_region
          _
        $region24: #{tpu_custom_call.1} parent=11 // pred_fallthru
          _
        // Predicated region
        $region25: #{tpu_custom_call.1} parent=11 // pred_check
          %p262 = pneg %p128
        $region26: #{tpu_custom_call.1} parent=11 // pred_check_branch
          %264 = sbr.rel (%p262) target = $region28
        $region27: #{tpu_custom_call.1} parent=11 // pred_region
          _
        $region28: #{tpu_custom_call.1} parent=11 // pred_fallthru
          _
        // Predicated region
        $region29: #{tpu_custom_call.1} parent=11 // pred_check
          %p265 = pneg %p149
        $region30: #{tpu_custom_call.1} parent=11 // pred_check_branch
          %267 = sbr.rel (%p265) target = $region32
        $region31: #{tpu_custom_call.1} parent=11 // pred_region
          _
        $region32: #{tpu_custom_call.1} parent=11 // pred_fallthru
          _
        // Predicated region
        $region33: #{tpu_custom_call.1} parent=11 // pred_check
          %p268 = pneg %p170
        $region34: #{tpu_custom_call.1} parent=11 // pred_check_branch
          %270 = sbr.rel (%p268) target = $region36
        $region35: #{tpu_custom_call.1} parent=11 // pred_region
          _
        $region36: #{tpu_custom_call.1} parent=11 // pred_fallthru
          _
        // Predicated region
        $region37: #{tpu_custom_call.1} parent=11 // pred_check
          %p271 = pneg %p191
        $region38: #{tpu_custom_call.1} parent=11 // pred_check_branch
          %273 = sbr.rel (%p271) target = $region40
        $region39: #{tpu_custom_call.1} parent=11 // pred_region
          _
        $region40: #{tpu_custom_call.1} parent=11 // pred_fallthru
          _
        // Predicated region
        $region41: #{tpu_custom_call.1} parent=11 // pred_check
          %p274 = pneg %p212
        $region42: #{tpu_custom_call.1} parent=11 // pred_check_branch
          %276 = sbr.rel (%p274) target = $region44
        $region43: #{tpu_custom_call.1} parent=11 // pred_region
          _
        $region44: #{tpu_custom_call.1} parent=11 // pred_fallthru
          _
      $region12: #{tpu_custom_call.1} parent=5 // pred_fallthru
        _
      %p277 = scmp.lt.s32.totalorder %s18, 2
      // Predicated region
      $region45: #{tpu_custom_call.1} parent=5 // pred_check
        %p278 = pneg %p277
      $region46: #{tpu_custom_call.1} parent=5 // pred_check_branch
        %280 = sbr.rel (%p278) target = $region48
      $region47: #{tpu_custom_call.1} parent=5 // pred_region
        // Predicated region
        $region49: #{tpu_custom_call.1} parent=47 // pred_check
          %p281 = pneg %p38
        $region50: #{tpu_custom_call.1} parent=47 // pred_check_branch
          %283 = sbr.rel (%p281) target = $region52
        $region51: #{tpu_custom_call.1} parent=47 // pred_region
          %p284 = scmp.lt.s32.totalorder %s18, 1
          %s285 = scalar_select %p284, %s18, 1
          %s286 = smul.addr %s285, 8
          %s287 = scalar_lea.vmem %s0, %s286
        $region52: #{tpu_custom_call.1} parent=47 // pred_fallthru
          _
      $region48: #{tpu_custom_call.1} parent=5 // pred_fallthru
        _
      %p288 = scmp.le.s32.totalorder 1, %s18
      %p289 = scmp.lt.s32.totalorder %s18, 3
      %p290 = pnand %p288, %p289
      %p291 = pneg %p290
      // Predicated region
      $region53: #{tpu_custom_call.1} parent=5 // pred_check
        _
      $region54: #{tpu_custom_call.1} parent=5 // pred_check_branch
        %293 = sbr.rel (%p290) target = $region56
      $region55: #{tpu_custom_call.1} parent=5 // pred_region
        %s294 = ssub.s32 %s18, 1
        %p295 = scmp.lt.s32.totalorder %s23, 1
        %s296 = scalar_select %p295, %s23, 1
        %s297 = smul.addr %s296, 8
        %s298 = scalar_lea.vmem %s0, %s297
        %p299 = pneg %p44
        %p300 = pneg %p41
        %p301 = pneg %p65
        %p302 = pneg %p62
        %p303 = pneg %p86
        %p304 = pneg %p83
        %p305 = pneg %p107
        %p306 = pneg %p104
        %p307 = pneg %p128
        %p308 = pneg %p125
        %p309 = pneg %p149
        %p310 = pneg %p146
        %p311 = pneg %p170
        %p312 = pneg %p167
        %p313 = pneg %p191
        %p314 = pneg %p188
        %p315 = pneg %p212
        %p316 = pneg %p209
        %p317 = pneg %p238
        %p318 = pneg %p235
        %s319 = sand.u32 %s225, 1
        %s320 = scalar_lea.sflag [#allocation3], %s319
        %s321 = sand.u32 %s225, 1
        %s322 = smul.addr %s321, 8
        %s323 = scalar_lea.vmem [#allocation2], %s322
        %p324 = scmp.lt.s32.totalorder %s23, 1
        %s325 = scalar_select %p324, %s23, 1
        %s326 = smul.addr %s325, 8
        %s327 = scalar_lea.vmem %s0, %s326
        %v329 = vld [vmem:[%s1] sm:$0x1]
        %v330 = vld [vmem:[%s2] sm:$0x1]
        %v331 = vld [vmem:[%s4] sm:$0x1]
        %v332 = vld [vmem:[%s5] sm:$0x1]
        %v333 = vld [vmem:[%s6] sm:$0x1]
        %v334 = vld [vmem:[%s8] sm:$0x1]
        %v335 = vld [vmem:[%s3] sm:$0xf]
        %v336 = vld [vmem:[%s3 + $0x4] sm:$0xf]
        %v337 = vld [vmem:[%s3 + $0x8] sm:$0xf]
        %v338 = vld [vmem:[%s3 + $0xc] sm:$0xf]
        %v339 = vld [vmem:[%s7] sm:$0xf]
        %v340 = vld [vmem:[%s7 + $0x4] sm:$0xf]
        %v341 = vld [vmem:[%s7 + $0x8] sm:$0xf]
        %v342 = vld [vmem:[%s7 + $0xc] sm:$0xf]
        %v343 = vld [vmem:[%s7 + $0x10] sm:$0xf]
        %v344 = vld [vmem:[%s7 + $0x14] sm:$0xf]
        %v345 = vld [vmem:[%s7 + $0x18] sm:$0xf]
        %v346 = vld [vmem:[%s7 + $0x1c] sm:$0xf]
        %v347 = vld [vmem:[%s327] sm:$0xff]
        %vm348 = vcmask 261120
        %v349 = vsel %vm348, %v347, 0.0
        %350 = vadd.xlane.f32.xlu0 %v349
        %v351 = vpop.xlane.xlu0 %350
        %v352 = vmul.f32 %v347, %v347
        %v353 = vsel %vm348, %v352, 0.0
        %354 = vadd.xlane.f32.xlu0 %v353
        %v355 = vpop.xlane.xlu0 %354
        %v356 = vmul.f32 %v351, 0.03125
        %v357 = vmul.f32 %v355, 0.03125
        %v358 = vmul.f32 %v356, %v356
        %v359 = vsub.f32 %v357, %v358
        %v360 = vmax.f32 %v359, 0.0
        %v361 = vadd.f32 %v360, 1e-05
        %v362 = vrsqrt.pop %v361
        %v364 = vlaneseq
        %v365 = vshrl.u32 %v364, 7
        %v366 = vsub.s32 0, %v365
        %v367 = vrot.slane %v329, %v366
        %v369 = vmul.f32 %v362, %v367
        %v370 = vmul.f32 %v347, %v369
        %v371 = vmul.f32 %v356, %v369
        %v373 = vlaneseq
        %v374 = vshrl.u32 %v373, 7
        %v375 = vsub.s32 0, %v374
        %v376 = vrot.slane %v330, %v375
        %v378 = vsub.f32 %v376, %v371
        %v379 = vadd.f32 %v370, %v378
        %v380 = vpack.c.bf16 %v379, %v379
        %v382 = vlaneseq
        %v383 = vshrl.u32 %v382, 7
        %v384 = vsub.s32 0, %v383
        %v385 = vrot.slane %v331, %v384
        %v391 = vunpack.c.l.b16 %v335
        %v392 = vunpack.c.l.b16 %v336
        %v393 = vunpack.c.l.b16 %v337
        %v394 = vunpack.c.l.b16 %v338
        %v395 = vpack.c.b16 %v392, %v391
        %v396 = vpack.c.b16 %v394, %v393
        %v400 = vsel %vm348, %v380, 0
        %402 = vmatprep.subr.bf16.mxu0 0
        %403 = vmatpush1.bf16.msra.mxu0 0
        %404 = vmatprep.subr.bf16.mxu0 0
        %405 = vmatpush1.bf16.msra.mxu0 0
        %406 = vmatprep.subr.bf16.mxu0 0
        %407 = vmatpush1.bf16.msra.mxu0 0
        %408 = vmatprep.subr.bf16.mxu0 0
        %409 = vmatpush1.bf16.msra.mxu0 0
        %410 = vmatprep.subr.bf16.mxu0 0
        %411 = vmatpush1.bf16.msra.mxu0 0
        %412 = vmatprep.subr.bf16.mxu0 0
        %413 = vmatpush1.bf16.msra.mxu0 0
        %414 = vmatprep.subr.bf16.mxu0 0
        %415 = vmatpush1.bf16.msra.mxu0 %v396
        %416 = vmatprep.subr.bf16.mxu0 0
        %417 = vmatpush1.bf16.msra.mxu0 %v395
        %418 = vmatprep.subr.bf16.mxu0 0
        %419 = vmatpush2.bf16.msra.mxu0 0
        %420 = vmatprep.subr.bf16.mxu0 0
        %421 = vmatpush2.bf16.msra.mxu0 0
        %422 = vmatprep.subr.bf16.mxu0 0
        %423 = vmatpush2.bf16.msra.mxu0 0
        %424 = vmatprep.subr.bf16.mxu0 0
        %425 = vmatpush2.bf16.msra.mxu0 0
        %426 = vmatprep.subr.bf16.mxu0 0
        %427 = vmatpush2.bf16.msra.mxu0 0
        %428 = vmatprep.subr.bf16.mxu0 0
        %429 = vmatpush2.bf16.msra.mxu0 0
        %430 = vmatprep.subr.bf16.mxu0 0
        %431 = vmatpush2.bf16.msra.mxu0 0
        %432 = vmatprep.subr.bf16.mxu0 0
        %433 = vmatpush2.bf16.msra.mxu0 0
        %434 = vmatprep.mubr.bf16.mxu0 0
        %435 = vmatmul.mubr.bf16.gmra.mxu0 %v400
        %v436 = vpop.f32.mrf.mxu0
        %v437 = vadd.f32 %v385, %v436
        %v438 = vpop.f32.mrf.mxu0
        %v439 = vpop.f32.mrf.mxu0
        %v440 = vpop.f32.mrf.mxu0
        %441 = vdwg.mxu0
        %v442 = vmax.f32 %v437, 0.0
        %vm443 = vcmask 523264
        %v444 = vsel %vm443, %v442, 0.0
        %445 = vadd.xlane.f32.xlu0 %v444
        %v446 = vpop.xlane.xlu0 %445
        %v447 = vmul.f32 %v442, %v442
        %v448 = vsel %vm443, %v447, 0.0
        %449 = vadd.xlane.f32.xlu0 %v448
        %v450 = vpop.xlane.xlu0 %449
        %v451 = vmul.f32 %v446, 0.015625
        %v452 = vmul.f32 %v450, 0.015625
        %v453 = vmul.f32 %v451, %v451
        %v454 = vsub.f32 %v452, %v453
        %v455 = vmax.f32 %v454, 0.0
        %v456 = vadd.f32 %v455, 1e-05
        %v457 = vrsqrt.pop %v456
        %v459 = vlaneseq
        %v460 = vshrl.u32 %v459, 7
        %v461 = vsub.s32 0, %v460
        %v462 = vrot.slane %v332, %v461
        %v464 = vmul.f32 %v457, %v462
        %v465 = vmul.f32 %v442, %v464
        %v466 = vmul.f32 %v451, %v464
        %v468 = vlaneseq
        %v469 = vshrl.u32 %v468, 7
        %v470 = vsub.s32 0, %v469
        %v471 = vrot.slane %v333, %v470
        %v473 = vsub.f32 %v471, %v466
        %v474 = vadd.f32 %v465, %v473
        %v475 = vpack.c.bf16 %v474, %v474
        %v477 = vlaneseq
        %v478 = vshrl.u32 %v477, 7
        %v479 = vsub.s32 0, %v478
        %v480 = vrot.slane %v334, %v479
        %v490 = vunpack.c.l.b16 %v339
        %v491 = vunpack.c.l.b16 %v340
        %v492 = vunpack.c.l.b16 %v341
        %v493 = vunpack.c.l.b16 %v342
        %v494 = vunpack.c.l.b16 %v343
        %v495 = vunpack.c.l.b16 %v344
        %v496 = vunpack.c.l.b16 %v345
        %v497 = vunpack.c.l.b16 %v346
        %v498 = vpack.c.b16 %v491, %v490
        %v499 = vpack.c.b16 %v493, %v492
        %v500 = vpack.c.b16 %v495, %v494
        %v501 = vpack.c.b16 %v497, %v496
        %v507 = vsel %vm443, %v475, 0
        %509 = vmatprep.subr.bf16.mxu0 0
        %510 = vmatpush1.bf16.msra.mxu0 0
        %511 = vmatprep.subr.bf16.mxu0 0
        %512 = vmatpush1.bf16.msra.mxu0 0
        %513 = vmatprep.subr.bf16.mxu0 0
        %514 = vmatpush1.bf16.msra.mxu0 0
        %515 = vmatprep.subr.bf16.mxu0 0
        %516 = vmatpush1.bf16.msra.mxu0 0
        %517 = vmatprep.subr.bf16.mxu0 0
        %518 = vmatpush1.bf16.msra.mxu0 %v501
        %519 = vmatprep.subr.bf16.mxu0 0
        %520 = vmatpush1.bf16.msra.mxu0 %v500
        %521 = vmatprep.subr.bf16.mxu0 0
        %522 = vmatpush1.bf16.msra.mxu0 %v499
        %523 = vmatprep.subr.bf16.mxu0 0
        %524 = vmatpush1.bf16.msra.mxu0 %v498
        %525 = vmatprep.subr.bf16.mxu0 0
        %526 = vmatpush2.bf16.msra.mxu0 0
        %527 = vmatprep.subr.bf16.mxu0 0
        %528 = vmatpush2.bf16.msra.mxu0 0
        %529 = vmatprep.subr.bf16.mxu0 0
        %530 = vmatpush2.bf16.msra.mxu0 0
        %531 = vmatprep.subr.bf16.mxu0 0
        %532 = vmatpush2.bf16.msra.mxu0 0
        %533 = vmatprep.subr.bf16.mxu0 0
        %534 = vmatpush2.bf16.msra.mxu0 0
        %535 = vmatprep.subr.bf16.mxu0 0
        %536 = vmatpush2.bf16.msra.mxu0 0
        %537 = vmatprep.subr.bf16.mxu0 0
        %538 = vmatpush2.bf16.msra.mxu0 0
        %539 = vmatprep.subr.bf16.mxu0 0
        %540 = vmatpush2.bf16.msra.mxu0 0
        %541 = vmatprep.mubr.bf16.mxu0 0
        %542 = vmatmul.mubr.bf16.gmra.mxu0 %v507
        %v543 = vpop.f32.mrf.mxu0
        %v544 = vadd.f32 %v480, %v543
        %v545 = vpop.f32.mrf.mxu0
        %v546 = vpop.f32.mrf.mxu0
        %v547 = vpop.f32.mrf.mxu0
        %548 = vdwg.mxu0
        %v549 = vadd.f32 %v544, %v347
        %v550 = vmax.f32 %v549, 0.0
        %551 = vst.msk [vmem:[%s323] sm:$0xff] %vm348, %v550
        %s552 = sand.u32 %s225, 1
        %s553 = scalar_lea.sflag [#allocation3], %s552
        %s554 = sand.u32 %s225, 1
        %s555 = smul.addr %s554, 8
        %s556 = scalar_lea.vmem [#allocation2], %s555
        // Predicated region
        $region57: #{tpu_custom_call.1} parent=55 // pred_check
          %p557 = pneg %p235
        $region58: #{tpu_custom_call.1} parent=55 // pred_check_branch
          %559 = sbr.rel (%p557) target = $region60
        $region59: #{tpu_custom_call.1} parent=55 // pred_region
          %s561 = ssub.s32 128, 128
          %562 = vsyncadd %s553, %s561
          %s563 = smul.addr %s23, 128
          %s564 = scalar_lea.hbm %s9, %s563
          %s566 = sshll.u32 %s556, 4
          %s567 = int_to_ptr.vmem [resolvable:$true] %s566
          %569 = dma.vmem_to_hbm [thread:$0]  %s567, 128, %s564, %s553
        $region60: #{tpu_custom_call.1} parent=55 // pred_fallthru
          _
      $region56: #{tpu_custom_call.1} parent=5 // pred_fallthru
        _
      %p570 = scmp.le.s32.totalorder 2, %s18
      // Predicated region
      $region61: #{tpu_custom_call.1} parent=5 // pred_check
        %p571 = pneg %p570
      $region62: #{tpu_custom_call.1} parent=5 // pred_check_branch
        %573 = sbr.rel (%p571) target = $region64
      $region63: #{tpu_custom_call.1} parent=5 // pred_region
        %s574 = ssub.s32 %s18, 2
        // Predicated region
        $region65: #{tpu_custom_call.1} parent=63 // pred_check
          %p575 = pneg %p241
        $region66: #{tpu_custom_call.1} parent=63 // pred_check_branch
          %577 = sbr.rel (%p575) target = $region68
        $region67: #{tpu_custom_call.1} parent=63 // pred_region
          %s578 = sand.u32 %s226, 1
          %s579 = scalar_lea.sflag [#allocation3], %s578
          %s580 = sand.u32 %s226, 1
          %s581 = smul.addr %s580, 8
          %s582 = scalar_lea.vmem [#allocation2], %s581
          %583 = dma.done %s579, 128
        $region68: #{tpu_custom_call.1} parent=63 // pred_fallthru
          _
      $region64: #{tpu_custom_call.1} parent=5 // pred_fallthru
        _
    $region6: #{tpu_custom_call.1} parent=1 // loop_footer
      %s22 = sadd.s32 1, %s18
    $region7: #{tpu_custom_call.1} parent=1 // loop_footer_branch
      %17 = sbr.rel target = $region3
    $region8: #{tpu_custom_call.1} parent=1 // loop_exit
      _
    %584 = vsyncpa [#allocation3], 1
    %s585 = scalar_lea.sflag [#allocation3], 1
    %586 = vsyncpa %s585, 1

// kernel: tpu_custom_call.1
$region0: #{tpu_custom_call.1}
  #allocation0 [shape = 'u32[]', space=smem, size = 0x4, offset = 0x4, fixed_abs, tag = 'smem constant byte address 0x4 - core index']
  #allocation1 [shape = 'u32[144,128]{1,0:T(1,128)}', space=vmem, size = 0x12000, scoped, tag = 'internal scratch']
  %s0 = inlined_call_operand.vmem [shape: f32[16,32], index: 0, kind: input, shape index: {}]
  %s1 = inlined_call_operand.vmem [shape: f32[1,32], index: 1, kind: input, shape index: {}]
  %s2 = inlined_call_operand.vmem [shape: f32[1,32], index: 2, kind: input, shape index: {}]
  %s3 = inlined_call_operand.vmem [shape: bf16[32,64], index: 3, kind: input, shape index: {}]
  %s4 = inlined_call_operand.vmem [shape: f32[1,64], index: 4, kind: input, shape index: {}]
  %s5 = inlined_call_operand.vmem [shape: f32[1,64], index: 5, kind: input, shape index: {}]
  %s6 = inlined_call_operand.vmem [shape: f32[1,64], index: 6, kind: input, shape index: {}]
  %s7 = inlined_call_operand.vmem [shape: bf16[64,32], index: 7, kind: input, shape index: {}]
  %s8 = inlined_call_operand.vmem [shape: f32[1,32], index: 8, kind: input, shape index: {}]
  %s9 = inlined_call_operand.hbm [shape: f32[16,32], index: 9, kind: output, shape index: {}]
  %s10 = sld [smem:[#allocation0]]
  $region69: #{tpu_custom_call.1} parent=0
    _
  %s12 = ssub.s32 1, %s10
  %s13 = scalar_select 0, %s12, %s10
  $region1: #{tpu_custom_call.1} parent=0
    #allocation2 [shape = 'u8[8192]{0}', space=vmem, size = 0x2000, scoped, tag = 'output window, operand 0']
    #allocation3 [shape = 's32[2]{0}', space=sflag, size = 0x8, scoped, tag = 'scoped memory for tpu_custom_call.1']
    %14 = vsyncpa [#allocation3], 0
    %s15 = scalar_lea.sflag [#allocation3], 1
    %16 = vsyncpa %s15, 0
    loop: start=0, step=1, limit=4
    $region2: #{tpu_custom_call.1} parent=1 // loop_pre_header
      _
    $region3: #{tpu_custom_call.1} parent=1 // loop_header
      %s18 = sphi 0, %s22
      %p19 = scmp.ge.s32.totalorder %s18, 4
      %s28 = sphi 0, %s30
      %s31 = sphi 0, %s28
      %s32 = sphi 0, %s31
      %s48 = sphi 0, %s32
      %s52 = sphi 0, %s52
      %s54 = sphi 0, %s52
      %s55 = sphi 0, %s54
      %s69 = sphi 0, %s55
      %s73 = sphi 0, %s73
      %s75 = sphi 0, %s73
      %s76 = sphi 0, %s75
      %s90 = sphi 0, %s76
      %s94 = sphi 0, %s94
      %s96 = sphi 0, %s94
      %s97 = sphi 0, %s96
      %s111 = sphi 0, %s97
      %s115 = sphi 0, %s115
      %s117 = sphi 0, %s115
      %s118 = sphi 0, %s117
      %s132 = sphi 0, %s118
      %s136 = sphi 0, %s136
      %s138 = sphi 0, %s136
      %s139 = sphi 0, %s138
      %s153 = sphi 0, %s139
      %s157 = sphi 0, %s157
      %s159 = sphi 0, %s157
      %s160 = sphi 0, %s159
      %s174 = sphi 0, %s160
      %s178 = sphi 0, %s178
      %s180 = sphi 0, %s178
      %s181 = sphi 0, %s180
      %s195 = sphi 0, %s181
      %s199 = sphi 0, %s199
      %s201 = sphi 0, %s199
      %s202 = sphi 0, %s201
      %s216 = sphi 0, %s202
      %s222 = sphi 0, %s224
      %s225 = sphi 0, %s222
      %s226 = sphi 0, %s225
      %s242 = sphi 0, %s226
    $region4: #{tpu_custom_call.1} parent=1 // loop_header_branch
      %21 = sbr.rel (%p19) target = $region8
    $region5: #{tpu_custom_call.1} parent=1 // loop_body
      %s23 = ssub.s32 %s18, 1
      %s24 = ssub.s32 %s18, 2
      %s25 = sadd.s32 %s18, 1
      %s26 = ssub.s32 %s18, %s25
      %p27 = scmp.eq.s32.totalorder %s26, 0
      %s29 = sadd.s32 %s28, 1
      %s30 = scalar_select %p27, %s28, %s29
      %p33 = pneg %p27
      %p34 = scmp.eq.s32.totalorder %s18, 1
      %p35 = por %p33, %p34
      %p36 = scmp.ne.s32.totalorder %s28, %s31
      %p37 = scmp.eq.s32.totalorder %s18, 0
      %p38 = por %p36, %p37
      %p39 = scmp.ne.s32.totalorder %s28, %s31
      %p40 = scmp.eq.s32.totalorder %s23, 1
      %p41 = por %p39, %p40
      %p42 = scmp.ne.s32.totalorder %s31, %s32
      %p43 = scmp.eq.s32.totalorder %s23, 0
      %p44 = por %p42, %p43
      %p45 = scmp.ne.s32.totalorder %s31, %s32
      %p46 = scmp.eq.s32.totalorder %s24, 1
      %p47 = por %p45, %p46
      %p49 = scmp.ne.s32.totalorder %s32, %s48
      %p50 = scmp.eq.s32.totalorder %s24, 0
      %p51 = por %p49, %p50
      %s53 = sadd.s32 %s52, 1
      %p56 = scmp.eq.s32.totalorder %s18, 1
      %p57 = scmp.ne.s32.totalorder %s52, %s54
      %p58 = scmp.eq.s32.totalorder %s18, 0
      %p59 = por %p57, %p58
      %p60 = scmp.ne.s32.totalorder %s52, %s54
      %p61 = scmp.eq.s32.totalorder %s23, 1
      %p62 = por %p60, %p61
      %p63 = scmp.ne.s32.totalorder %s54, %s55
      %p64 = scmp.eq.s32.totalorder %s23, 0
      %p65 = por %p63, %p64
      %p66 = scmp.ne.s32.totalorder %s54, %s55
      %p67 = scmp.eq.s32.totalorder %s24, 1
      %p68 = por %p66, %p67
      %p70 = scmp.ne.s32.totalorder %s55, %s69
      %p71 = scmp.eq.s32.totalorder %s24, 0
      %p72 = por %p70, %p71
      %s74 = sadd.s32 %s73, 1
      %p77 = scmp.eq.s32.totalorder %s18, 1
      %p78 = scmp.ne.s32.totalorder %s73, %s75
      %p79 = scmp.eq.s32.totalorder %s18, 0
      %p80 = por %p78, %p79
      %p81 = scmp.ne.s32.totalorder %s73, %s75
      %p82 = scmp.eq.s32.totalorder %s23, 1
      %p83 = por %p81, %p82
      %p84 = scmp.ne.s32.totalorder %s75, %s76
      %p85 = scmp.eq.s32.totalorder %s23, 0
      %p86 = por %p84, %p85
      %p87 = scmp.ne.s32.totalorder %s75, %s76
      %p88 = scmp.eq.s32.totalorder %s24, 1
      %p89 = por %p87, %p88
      %p91 = scmp.ne.s32.totalorder %s76, %s90
      %p92 = scmp.eq.s32.totalorder %s24, 0
      %p93 = por %p91, %p92
      %s95 = sadd.s32 %s94, 1
      %p98 = scmp.eq.s32.totalorder %s18, 1
      %p99 = scmp.ne.s32.totalorder %s94, %s96
      %p100 = scmp.eq.s32.totalorder %s18, 0
      %p101 = por %p99, %p100
      %p102 = scmp.ne.s32.totalorder %s94, %s96
      %p103 = scmp.eq.s32.totalorder %s23, 1
      %p104 = por %p102, %p103
      %p105 = scmp.ne.s32.totalorder %s96, %s97
      %p106 = scmp.eq.s32.totalorder %s23, 0
      %p107 = por %p105, %p106
      %p108 = scmp.ne.s32.totalorder %s96, %s97
      %p109 = scmp.eq.s32.totalorder %s24, 1
      %p110 = por %p108, %p109
      %p112 = scmp.ne.s32.totalorder %s97, %s111
      %p113 = scmp.eq.s32.totalorder %s24, 0
      %p114 = por %p112, %p113
      %s116 = sadd.s32 %s115, 1
      %p119 = scmp.eq.s32.totalorder %s18, 1
      %p120 = scmp.ne.s32.totalorder %s115, %s117
      %p121 = scmp.eq.s32.totalorder %s18, 0
      %p122 = por %p120, %p121
      %p123 = scmp.ne.s32.totalorder %s115, %s117
      %p124 = scmp.eq.s32.totalorder %s23, 1
      %p125 = por %p123, %p124
      %p126 = scmp.ne.s32.totalorder %s117, %s118
      %p127 = scmp.eq.s32.totalorder %s23, 0
      %p128 = por %p126, %p127
      %p129 = scmp.ne.s32.totalorder %s117, %s118
      %p130 = scmp.eq.s32.totalorder %s24, 1
      %p131 = por %p129, %p130
      %p133 = scmp.ne.s32.totalorder %s118, %s132
      %p134 = scmp.eq.s32.totalorder %s24, 0
      %p135 = por %p133, %p134
      %s137 = sadd.s32 %s136, 1
      %p140 = scmp.eq.s32.totalorder %s18, 1
      %p141 = scmp.ne.s32.totalorder %s136, %s138
      %p142 = scmp.eq.s32.totalorder %s18, 0
      %p143 = por %p141, %p142
      %p144 = scmp.ne.s32.totalorder %s136, %s138
      %p145 = scmp.eq.s32.totalorder %s23, 1
      %p146 = por %p144, %p145
      %p147 = scmp.ne.s32.totalorder %s138, %s139
      %p148 = scmp.eq.s32.totalorder %s23, 0
      %p149 = por %p147, %p148
      %p150 = scmp.ne.s32.totalorder %s138, %s139
      %p151 = scmp.eq.s32.totalorder %s24, 1
      %p152 = por %p150, %p151
      %p154 = scmp.ne.s32.totalorder %s139, %s153
      %p155 = scmp.eq.s32.totalorder %s24, 0
      %p156 = por %p154, %p155
      %s158 = sadd.s32 %s157, 1
      %p161 = scmp.eq.s32.totalorder %s18, 1
      %p162 = scmp.ne.s32.totalorder %s157, %s159
      %p163 = scmp.eq.s32.totalorder %s18, 0
      %p164 = por %p162, %p163
      %p165 = scmp.ne.s32.totalorder %s157, %s159
      %p166 = scmp.eq.s32.totalorder %s23, 1
      %p167 = por %p165, %p166
      %p168 = scmp.ne.s32.totalorder %s159, %s160
      %p169 = scmp.eq.s32.totalorder %s23, 0
      %p170 = por %p168, %p169
      %p171 = scmp.ne.s32.totalorder %s159, %s160
      %p172 = scmp.eq.s32.totalorder %s24, 1
      %p173 = por %p171, %p172
      %p175 = scmp.ne.s32.totalorder %s160, %s174
      %p176 = scmp.eq.s32.totalorder %s24, 0
      %p177 = por %p175, %p176
      %s179 = sadd.s32 %s178, 1
      %p182 = scmp.eq.s32.totalorder %s18, 1
      %p183 = scmp.ne.s32.totalorder %s178, %s180
      %p184 = scmp.eq.s32.totalorder %s18, 0
      %p185 = por %p183, %p184
      %p186 = scmp.ne.s32.totalorder %s178, %s180
      %p187 = scmp.eq.s32.totalorder %s23, 1
      %p188 = por %p186, %p187
      %p189 = scmp.ne.s32.totalorder %s180, %s181
      %p190 = scmp.eq.s32.totalorder %s23, 0
      %p191 = por %p189, %p190
      %p192 = scmp.ne.s32.totalorder %s180, %s181
      %p193 = scmp.eq.s32.totalorder %s24, 1
      %p194 = por %p192, %p193
      %p196 = scmp.ne.s32.totalorder %s181, %s195
      %p197 = scmp.eq.s32.totalorder %s24, 0
      %p198 = por %p196, %p197
      %s200 = sadd.s32 %s199, 1
      %p203 = scmp.eq.s32.totalorder %s18, 1
      %p204 = scmp.ne.s32.totalorder %s199, %s201
      %p205 = scmp.eq.s32.totalorder %s18, 0
      %p206 = por %p204, %p205
      %p207 = scmp.ne.s32.totalorder %s199, %s201
      %p208 = scmp.eq.s32.totalorder %s23, 1
      %p209 = por %p207, %p208
      %p210 = scmp.ne.s32.totalorder %s201, %s202
      %p211 = scmp.eq.s32.totalorder %s23, 0
      %p212 = por %p210, %p211
      %p213 = scmp.ne.s32.totalorder %s201, %s202
      %p214 = scmp.eq.s32.totalorder %s24, 1
      %p215 = por %p213, %p214
      %p217 = scmp.ne.s32.totalorder %s202, %s216
      %p218 = scmp.eq.s32.totalorder %s24, 0
      %p219 = por %p217, %p218
      %s220 = ssub.s32 %s18, %s25
      %p221 = scmp.eq.s32.totalorder %s220, 0
      %s223 = sadd.s32 %s222, 1
      %s224 = scalar_select %p221, %s222, %s223
      %p227 = pneg %p221
      %p228 = scmp.eq.s32.totalorder %s18, 1
      %p229 = por %p227, %p228
      %p230 = scmp.ne.s32.totalorder %s222, %s225
      %p231 = scmp.eq.s32.totalorder %s18, 0
      %p232 = por %p230, %p231
      %p233 = scmp.ne.s32.totalorder %s222, %s225
      %p234 = scmp.eq.s32.totalorder %s23, 1
      %p235 = por %p233, %p234
      %p236 = scmp.ne.s32.totalorder %s225, %s226
      %p237 = scmp.eq.s32.totalorder %s23, 0
      %p238 = por %p236, %p237
      %p239 = scmp.ne.s32.totalorder %s225, %s226
      %p240 = scmp.eq.s32.totalorder %s24, 1
      %p241 = por %p239, %p240
      %p243 = scmp.ne.s32.totalorder %s226, %s242
      %p244 = scmp.eq.s32.totalorder %s24, 0
      %p245 = por %p243, %p244
      %p246 = scmp.le.s32.totalorder 1, %s18
      %p247 = scmp.lt.s32.totalorder %s18, 3
      %p248 = pnand %p246, %p247
      %p249 = pneg %p248
      // Predicated region
      $region9: #{tpu_custom_call.1} parent=5 // pred_check
        _
      $region10: #{tpu_custom_call.1} parent=5 // pred_check_branch
        %251 = sbr.rel (%p248) target = $region12
      $region11: #{tpu_custom_call.1} parent=5 // pred_region
        %s252 = ssub.s32 %s18, 1
        // Predicated region
        $region13: #{tpu_custom_call.1} parent=11 // pred_check
          %p253 = pneg %p65
        $region14: #{tpu_custom_call.1} parent=11 // pred_check_branch
          %255 = sbr.rel (%p253) target = $region16
        $region15: #{tpu_custom_call.1} parent=11 // pred_region
          _
        $region16: #{tpu_custom_call.1} parent=11 // pred_fallthru
          _
        // Predicated region
        $region17: #{tpu_custom_call.1} parent=11 // pred_check
          %p256 = pneg %p86
        $region18: #{tpu_custom_call.1} parent=11 // pred_check_branch
          %258 = sbr.rel (%p256) target = $region20
        $region19: #{tpu_custom_call.1} parent=11 // pred_region
          _
        $region20: #{tpu_custom_call.1} parent=11 // pred_fallthru
          _
        // Predicated region
        $region21: #{tpu_custom_call.1} parent=11 // pred_check
          %p259 = pneg %p107
        $region22: #{tpu_custom_call.1} parent=11 // pred_check_branch
          %261 = sbr.rel (%p259) target = $region24
        $region23: #{tpu_custom_call.1} parent=11 // pred_region
          _
        $region24: #{tpu_custom_call.1} parent=11 // pred_fallthru
          _
        // Predicated region
        $region25: #{tpu_custom_call.1} parent=11 // pred_check
          %p262 = pneg %p128
        $region26: #{tpu_custom_call.1} parent=11 // pred_check_branch
          %264 = sbr.rel (%p262) target = $region28
        $region27: #{tpu_custom_call.1} parent=11 // pred_region
          _
        $region28: #{tpu_custom_call.1} parent=11 // pred_fallthru
          _
        // Predicated region
        $region29: #{tpu_custom_call.1} parent=11 // pred_check
          %p265 = pneg %p149
        $region30: #{tpu_custom_call.1} parent=11 // pred_check_branch
          %267 = sbr.rel (%p265) target = $region32
        $region31: #{tpu_custom_call.1} parent=11 // pred_region
          _
        $region32: #{tpu_custom_call.1} parent=11 // pred_fallthru
          _
        // Predicated region
        $region33: #{tpu_custom_call.1} parent=11 // pred_check
          %p268 = pneg %p170
        $region34: #{tpu_custom_call.1} parent=11 // pred_check_branch
          %270 = sbr.rel (%p268) target = $region36
        $region35: #{tpu_custom_call.1} parent=11 // pred_region
          _
        $region36: #{tpu_custom_call.1} parent=11 // pred_fallthru
          _
        // Predicated region
        $region37: #{tpu_custom_call.1} parent=11 // pred_check
          %p271 = pneg %p191
        $region38: #{tpu_custom_call.1} parent=11 // pred_check_branch
          %273 = sbr.rel (%p271) target = $region40
        $region39: #{tpu_custom_call.1} parent=11 // pred_region
          _
        $region40: #{tpu_custom_call.1} parent=11 // pred_fallthru
          _
        // Predicated region
        $region41: #{tpu_custom_call.1} parent=11 // pred_check
          %p274 = pneg %p212
        $region42: #{tpu_custom_call.1} parent=11 // pred_check_branch
          %276 = sbr.rel (%p274) target = $region44
        $region43: #{tpu_custom_call.1} parent=11 // pred_region
          _
        $region44: #{tpu_custom_call.1} parent=11 // pred_fallthru
          _
      $region12: #{tpu_custom_call.1} parent=5 // pred_fallthru
        _
      %p277 = scmp.lt.s32.totalorder %s18, 2
      // Predicated region
      $region45: #{tpu_custom_call.1} parent=5 // pred_check
        %p278 = pneg %p277
      $region46: #{tpu_custom_call.1} parent=5 // pred_check_branch
        %280 = sbr.rel (%p278) target = $region48
      $region47: #{tpu_custom_call.1} parent=5 // pred_region
        // Predicated region
        $region49: #{tpu_custom_call.1} parent=47 // pred_check
          %p281 = pneg %p38
        $region50: #{tpu_custom_call.1} parent=47 // pred_check_branch
          %283 = sbr.rel (%p281) target = $region52
        $region51: #{tpu_custom_call.1} parent=47 // pred_region
          %p284 = scmp.lt.s32.totalorder %s18, 1
          %s285 = scalar_select %p284, %s18, 1
          %s286 = smul.addr %s285, 8
          %s287 = scalar_lea.vmem %s0, %s286
        $region52: #{tpu_custom_call.1} parent=47 // pred_fallthru
          _
      $region48: #{tpu_custom_call.1} parent=5 // pred_fallthru
        _
      %p288 = scmp.le.s32.totalorder 1, %s18
      %p289 = scmp.lt.s32.totalorder %s18, 3
      %p290 = pnand %p288, %p289
      %p291 = pneg %p290
      // Predicated region
      $region53: #{tpu_custom_call.1} parent=5 // pred_check
        _
      $region54: #{tpu_custom_call.1} parent=5 // pred_check_branch
        %293 = sbr.rel (%p290) target = $region56
      $region55: #{tpu_custom_call.1} parent=5 // pred_region
        %s294 = ssub.s32 %s18, 1
        %p295 = scmp.lt.s32.totalorder %s23, 1
        %s296 = scalar_select %p295, %s23, 1
        %s297 = smul.addr %s296, 8
        %s298 = scalar_lea.vmem %s0, %s297
        %p299 = pneg %p44
        %p300 = pneg %p41
        %p301 = pneg %p65
        %p302 = pneg %p62
        %p303 = pneg %p86
        %p304 = pneg %p83
        %p305 = pneg %p107
        %p306 = pneg %p104
        %p307 = pneg %p128
        %p308 = pneg %p125
        %p309 = pneg %p149
        %p310 = pneg %p146
        %p311 = pneg %p170
        %p312 = pneg %p167
        %p313 = pneg %p191
        %p314 = pneg %p188
        %p315 = pneg %p212
        %p316 = pneg %p209
        %p317 = pneg %p238
        %p318 = pneg %p235
        %s319 = sand.u32 %s225, 1
        %s320 = scalar_lea.sflag [#allocation3], %s319
        %s321 = sand.u32 %s225, 1
        %s322 = smul.addr %s321, 8
        %s323 = scalar_lea.vmem [#allocation2], %s322
        %p324 = scmp.lt.s32.totalorder %s23, 1
        %s325 = scalar_select %p324, %s23, 1
        %s326 = smul.addr %s325, 8
        %s327 = scalar_lea.vmem %s0, %s326
        %v329 = vld [vmem:[%s1] sm:$0x1]
        %v330 = vld [vmem:[%s2] sm:$0x1]
        %v331 = vld [vmem:[%s4] sm:$0x1]
        %v332 = vld [vmem:[%s5] sm:$0x1]
        %v333 = vld [vmem:[%s6] sm:$0x1]
        %v334 = vld [vmem:[%s8] sm:$0x1]
        %v335 = vld [vmem:[%s3] sm:$0xf]
        %v336 = vld [vmem:[%s3 + $0x4] sm:$0xf]
        %v337 = vld [vmem:[%s3 + $0x8] sm:$0xf]
        %v338 = vld [vmem:[%s3 + $0xc] sm:$0xf]
        %v339 = vld [vmem:[%s7] sm:$0xf]
        %v340 = vld [vmem:[%s7 + $0x4] sm:$0xf]
        %v341 = vld [vmem:[%s7 + $0x8] sm:$0xf]
        %v342 = vld [vmem:[%s7 + $0xc] sm:$0xf]
        %v343 = vld [vmem:[%s7 + $0x10] sm:$0xf]
        %v344 = vld [vmem:[%s7 + $0x14] sm:$0xf]
        %v345 = vld [vmem:[%s7 + $0x18] sm:$0xf]
        %v346 = vld [vmem:[%s7 + $0x1c] sm:$0xf]
        %v347 = vld [vmem:[%s327] sm:$0xff]
        %vm348 = vcmask 261120
        %v349 = vsel %vm348, %v347, 0.0
        %350 = vadd.xlane.f32.xlu0 %v349
        %v351 = vpop.xlane.xlu0 %350
        %v352 = vmul.f32 %v347, %v347
        %v353 = vsel %vm348, %v352, 0.0
        %354 = vadd.xlane.f32.xlu0 %v353
        %v355 = vpop.xlane.xlu0 %354
        %v356 = vmul.f32 %v351, 0.03125
        %v357 = vmul.f32 %v355, 0.03125
        %v358 = vmul.f32 %v356, %v356
        %v359 = vsub.f32 %v357, %v358
        %v360 = vmax.f32 %v359, 0.0
        %v361 = vadd.f32 %v360, 1e-05
        %v362 = vrsqrt.pop %v361
        %v364 = vlaneseq
        %v365 = vshrl.u32 %v364, 7
        %v366 = vsub.s32 0, %v365
        %v367 = vrot.slane %v329, %v366
        %v369 = vmul.f32 %v362, %v367
        %v370 = vmul.f32 %v347, %v369
        %v371 = vmul.f32 %v356, %v369
        %v373 = vlaneseq
        %v374 = vshrl.u32 %v373, 7
        %v375 = vsub.s32 0, %v374
        %v376 = vrot.slane %v330, %v375
        %v378 = vsub.f32 %v376, %v371
        %v379 = vadd.f32 %v370, %v378
        %v380 = vpack.c.bf16 %v379, %v379
        %v382 = vlaneseq
        %v383 = vshrl.u32 %v382, 7
        %v384 = vsub.s32 0, %v383
        %v385 = vrot.slane %v331, %v384
        %v391 = vunpack.c.l.b16 %v335
        %v392 = vunpack.c.l.b16 %v336
        %v393 = vunpack.c.l.b16 %v337
        %v394 = vunpack.c.l.b16 %v338
        %v395 = vpack.c.b16 %v392, %v391
        %v396 = vpack.c.b16 %v394, %v393
        %v400 = vsel %vm348, %v380, 0
        %402 = vmatprep.subr.bf16.mxu0 0
        %403 = vmatpush1.bf16.msra.mxu0 0
        %404 = vmatprep.subr.bf16.mxu0 0
        %405 = vmatpush1.bf16.msra.mxu0 0
        %406 = vmatprep.subr.bf16.mxu0 0
        %407 = vmatpush1.bf16.msra.mxu0 0
        %408 = vmatprep.subr.bf16.mxu0 0
        %409 = vmatpush1.bf16.msra.mxu0 0
        %410 = vmatprep.subr.bf16.mxu0 0
        %411 = vmatpush1.bf16.msra.mxu0 0
        %412 = vmatprep.subr.bf16.mxu0 0
        %413 = vmatpush1.bf16.msra.mxu0 0
        %414 = vmatprep.subr.bf16.mxu0 0
        %415 = vmatpush1.bf16.msra.mxu0 %v396
        %416 = vmatprep.subr.bf16.mxu0 0
        %417 = vmatpush1.bf16.msra.mxu0 %v395
        %418 = vmatprep.subr.bf16.mxu0 0
        %419 = vmatpush2.bf16.msra.mxu0 0
        %420 = vmatprep.subr.bf16.mxu0 0
        %421 = vmatpush2.bf16.msra.mxu0 0
        %422 = vmatprep.subr.bf16.mxu0 0
        %423 = vmatpush2.bf16.msra.mxu0 0
        %424 = vmatprep.subr.bf16.mxu0 0
        %425 = vmatpush2.bf16.msra.mxu0 0
        %426 = vmatprep.subr.bf16.mxu0 0
        %427 = vmatpush2.bf16.msra.mxu0 0
        %428 = vmatprep.subr.bf16.mxu0 0
        %429 = vmatpush2.bf16.msra.mxu0 0
        %430 = vmatprep.subr.bf16.mxu0 0
        %431 = vmatpush2.bf16.msra.mxu0 0
        %432 = vmatprep.subr.bf16.mxu0 0
        %433 = vmatpush2.bf16.msra.mxu0 0
        %434 = vmatprep.mubr.bf16.mxu0 0
        %435 = vmatmul.mubr.bf16.gmra.mxu0 %v400
        %v436 = vpop.f32.mrf.mxu0
        %v437 = vadd.f32 %v385, %v436
        %v438 = vpop.f32.mrf.mxu0
        %v439 = vpop.f32.mrf.mxu0
        %v440 = vpop.f32.mrf.mxu0
        %441 = vdwg.mxu0
        %v442 = vmax.f32 %v437, 0.0
        %vm443 = vcmask 523264
        %v444 = vsel %vm443, %v442, 0.0
        %445 = vadd.xlane.f32.xlu0 %v444
        %v446 = vpop.xlane.xlu0 %445
        %v447 = vmul.f32 %v442, %v442
        %v448 = vsel %vm443, %v447, 0.0
        %449 = vadd.xlane.f32.xlu0 %v448
        %v450 = vpop.xlane.xlu0 %449
        %v451 = vmul.f32 %v446, 0.015625
        %v452 = vmul.f32 %v450, 0.015625
        %v453 = vmul.f32 %v451, %v451
        %v454 = vsub.f32 %v452, %v453
        %v455 = vmax.f32 %v454, 0.0
        %v456 = vadd.f32 %v455, 1e-05
        %v457 = vrsqrt.pop %v456
        %v459 = vlaneseq
        %v460 = vshrl.u32 %v459, 7
        %v461 = vsub.s32 0, %v460
        %v462 = vrot.slane %v332, %v461
        %v464 = vmul.f32 %v457, %v462
        %v465 = vmul.f32 %v442, %v464
        %v466 = vmul.f32 %v451, %v464
        %v468 = vlaneseq
        %v469 = vshrl.u32 %v468, 7
        %v470 = vsub.s32 0, %v469
        %v471 = vrot.slane %v333, %v470
        %v473 = vsub.f32 %v471, %v466
        %v474 = vadd.f32 %v465, %v473
        %v475 = vpack.c.bf16 %v474, %v474
        %v477 = vlaneseq
        %v478 = vshrl.u32 %v477, 7
        %v479 = vsub.s32 0, %v478
        %v480 = vrot.slane %v334, %v479
        %v490 = vunpack.c.l.b16 %v339
        %v491 = vunpack.c.l.b16 %v340
        %v492 = vunpack.c.l.b16 %v341
        %v493 = vunpack.c.l.b16 %v342
        %v494 = vunpack.c.l.b16 %v343
        %v495 = vunpack.c.l.b16 %v344
        %v496 = vunpack.c.l.b16 %v345
        %v497 = vunpack.c.l.b16 %v346
        %v498 = vpack.c.b16 %v491, %v490
        %v499 = vpack.c.b16 %v493, %v492
        %v500 = vpack.c.b16 %v495, %v494
        %v501 = vpack.c.b16 %v497, %v496
        %v507 = vsel %vm443, %v475, 0
        %509 = vmatprep.subr.bf16.mxu0 0
        %510 = vmatpush1.bf16.msra.mxu0 0
        %511 = vmatprep.subr.bf16.mxu0 0
        %512 = vmatpush1.bf16.msra.mxu0 0
        %513 = vmatprep.subr.bf16.mxu0 0
        %514 = vmatpush1.bf16.msra.mxu0 0
        %515 = vmatprep.subr.bf16.mxu0 0
        %516 = vmatpush1.bf16.msra.mxu0 0
        %517 = vmatprep.subr.bf16.mxu0 0
        %518 = vmatpush1.bf16.msra.mxu0 %v501
        %519 = vmatprep.subr.bf16.mxu0 0
        %520 = vmatpush1.bf16.msra.mxu0 %v500
        %521 = vmatprep.subr.bf16.mxu0 0
        %522 = vmatpush1.bf16.msra.mxu0 %v499
        %523 = vmatprep.subr.bf16.mxu0 0
        %524 = vmatpush1.bf16.msra.mxu0 %v498
        %525 = vmatprep.subr.bf16.mxu0 0
        %526 = vmatpush2.bf16.msra.mxu0 0
        %527 = vmatprep.subr.bf16.mxu0 0
        %528 = vmatpush2.bf16.msra.mxu0 0
        %529 = vmatprep.subr.bf16.mxu0 0
        %530 = vmatpush2.bf16.msra.mxu0 0
        %531 = vmatprep.subr.bf16.mxu0 0
        %532 = vmatpush2.bf16.msra.mxu0 0
        %533 = vmatprep.subr.bf16.mxu0 0
        %534 = vmatpush2.bf16.msra.mxu0 0
        %535 = vmatprep.subr.bf16.mxu0 0
        %536 = vmatpush2.bf16.msra.mxu0 0
        %537 = vmatprep.subr.bf16.mxu0 0
        %538 = vmatpush2.bf16.msra.mxu0 0
        %539 = vmatprep.subr.bf16.mxu0 0
        %540 = vmatpush2.bf16.msra.mxu0 0
        %541 = vmatprep.mubr.bf16.mxu0 0
        %542 = vmatmul.mubr.bf16.gmra.mxu0 %v507
        %v543 = vpop.f32.mrf.mxu0
        %v544 = vadd.f32 %v480, %v543
        %v545 = vpop.f32.mrf.mxu0
        %v546 = vpop.f32.mrf.mxu0
        %v547 = vpop.f32.mrf.mxu0
        %548 = vdwg.mxu0
        %v549 = vadd.f32 %v544, %v347
        %v550 = vmax.f32 %v549, 0.0
        %551 = vst.msk [vmem:[%s323] sm:$0xff] %vm348, %v550
        %s552 = sand.u32 %s225, 1
        %s553 = scalar_lea.sflag [#allocation3], %s552
        %s554 = sand.u32 %s225, 1
        %s555 = smul.addr %s554, 8
        %s556 = scalar_lea.vmem [#allocation2], %s555
        // Predicated region
        $region57: #{tpu_custom_call.1} parent=55 // pred_check
          %p557 = pneg %p235
        $region58: #{tpu_custom_call.1} parent=55 // pred_check_branch
          %559 = sbr.rel (%p557) target = $region60
        $region59: #{tpu_custom_call.1} parent=55 // pred_region
          %s561 = ssub.s32 128, 128
          %562 = vsyncadd %s553, %s561
          %s563 = smul.addr %s23, 128
          %s564 = scalar_lea.hbm %s9, %s563
          %s566 = sshll.u32 %s556, 4
          %s567 = int_to_ptr.vmem [resolvable:$true] %s566
          %569 = dma.vmem_to_hbm [thread:$0]  %s567, 128, %s564, %s553
        $region60: #{tpu_custom_call.1} parent=55 // pred_fallthru
          _
      $region56: #{tpu_custom_call.1} parent=5 // pred_fallthru
        _
      %p570 = scmp.le.s32.totalorder 2, %s18
      // Predicated region
      $region61: #{tpu_custom_call.1} parent=5 // pred_check
        %p571 = pneg %p570
      $region62: #{tpu_custom_call.1} parent=5 // pred_check_branch
        %573 = sbr.rel (%p571) target = $region64
      $region63: #{tpu_custom_call.1} parent=5 // pred_region
        %s574 = ssub.s32 %s18, 2
        // Predicated region
        $region65: #{tpu_custom_call.1} parent=63 // pred_check
          %p575 = pneg %p241
        $region66: #{tpu_custom_call.1} parent=63 // pred_check_branch
          %577 = sbr.rel (%p575) target = $region68
        $region67: #{tpu_custom_call.1} parent=63 // pred_region
          %s578 = sand.u32 %s226, 1
          %s579 = scalar_lea.sflag [#allocation3], %s578
          %s580 = sand.u32 %s226, 1
          %s581 = smul.addr %s580, 8
          %s582 = scalar_lea.vmem [#allocation2], %s581
          %583 = dma.done %s579, 128
        $region68: #{tpu_custom_call.1} parent=63 // pred_fallthru
          _
      $region64: #{tpu_custom_call.1} parent=5 // pred_fallthru
        _
    $region6: #{tpu_custom_call.1} parent=1 // loop_footer
      %s22 = sadd.s32 1, %s18
    $region7: #{tpu_custom_call.1} parent=1 // loop_footer_branch
      %17 = sbr.rel target = $region3
    $region8: #{tpu_custom_call.1} parent=1 // loop_exit
      _
    %584 = vsyncpa [#allocation3], 1
    %s585 = scalar_lea.sflag [#allocation3], 1
    %586 = vsyncpa %s585, 1

</llo_original>
